<compile_context>
chip_gen: v6e
topology: v6e:2x2x1
jax: 0.10.0
libtpu: 0.0.40
codegen_flags: <defaults>
</compile_context>

<pallas_src>
import functools

import jax
import jax.numpy as jnp
import numpy as np
from jax import lax
from jax.experimental import pallas as pl
from jax.experimental.pallas import tpu as pltpu

_LANE = 128
_BN_EPS = 1e-5


def autopad(k, p=None):
    if p is None:
        p = k // 2 if isinstance(k, int) else [x // 2 for x in k]
    return p


def _round_up(x, m):
    return (x + m - 1) // m * m


def _largest_divisor_at_most(n, cap):
    cap = max(1, min(n, cap))
    for d in range(cap, 0, -1):
        if n % d == 0:
            return d
    return 1


def _hardswish(x):
    # torch.nn.Hardswish: x * relu6(x + 3) / 6
    return x * jnp.clip(x + 3.0, 0.0, 6.0) * (1.0 / 6.0)


def _fold_bn(gamma, beta, mean, var):
    scale = gamma / jnp.sqrt(var + _BN_EPS)
    bias = beta - mean * scale
    return scale.astype(jnp.float32), bias.astype(jnp.float32)


@functools.lru_cache(maxsize=1)
def _vmem_budget():
    """Usable per-core VMEM (bytes) with ~8 MiB headroom for the compiler."""
    try:
        cap = int(pltpu.get_tpu_info().vmem_capacity_bytes)
    except Exception:
        cap = 64 << 20  # conservative default (v7x per-core VMEM)
    return max(cap - (8 << 20), 16 << 20)


@functools.lru_cache(maxsize=1)
def _single_buffer_ok():
    """One-time capability probe for pl.Buffered(1) resident blocks."""
    def _probe(a_ref, w_ref, o_ref):
        o_ref[...] = a_ref[...] + w_ref[...]

    a = jnp.arange(16 * 128, dtype=jnp.float32).reshape(16, 128)
    w = jnp.ones((8, 128), jnp.float32)
    try:
        out = pl.pallas_call(
            _probe,
            out_shape=jax.ShapeDtypeStruct((16, 128), jnp.float32),
            grid=(2,),
            in_specs=[pl.BlockSpec((8, 128), lambda i: (i, 0)),
                      pl.BlockSpec((8, 128), lambda i: (0, 0),
                                   pipeline_mode=pl.Buffered(1))],
            out_specs=pl.BlockSpec((8, 128), lambda i: (i, 0)),
        )(a, w)
        return bool(np.allclose(np.asarray(out), np.asarray(a) + 1.0))
    except Exception:
        return False


def _resident_spec(shape, grid_rank, single_buffer):
    """BlockSpec for a block that is identical for every grid step."""
    zeros = (0,) * len(shape)
    if grid_rank == 1:
        index_map = lambda i: zeros
    else:
        index_map = lambda i, j: zeros
    if single_buffer:
        # Resident block: a second pipeline buffer is pure VMEM waste.
        return pl.BlockSpec(shape, index_map, pipeline_mode=pl.Buffered(1))
    return pl.BlockSpec(shape, index_map)


# ----------------------------- 1x1 conv path --------------------------------

def _mm_bn_act_kernel(x_ref, w_ref, s_ref, b_ref, o_ref, *, act):
    """out = act((x @ w) * scale + bias) for one row tile (pointwise conv)."""
    y = jnp.dot(x_ref[...], w_ref[...], preferred_element_type=jnp.float32)
    y = y * s_ref[...] + b_ref[...]
    if act:
        y = _hardswish(y)
    o_ref[...] = y.astype(o_ref.dtype)


def _matmul_bn_act(x2d, w2d, scale, bias, act):
    """x2d: (M, c1) bf16, w2d: (c1, N) bf16, scale/bias: (1, N) f32 -> (M, N) bf16."""
    M, Kc = x2d.shape
    N = w2d.shape[1]
    budget = _vmem_budget()
    sb = _single_buffer_ok()

    # Memory-bound: pick the largest lane/sublane friendly row tile that fits.
    w_vmem = Kc * N * 2 * (1 if sb else 2)
    row_bytes = 2 * Kc * 2 + N * 4 + 2 * N * 2   # dbl-buf in + f32 y + dbl-buf bf16 out
    avail = max(budget - w_vmem - (4 << 20), 2 << 20)
    tile_m = int(min(avail // row_bytes, 2048))
    tile_m = max(256, (tile_m // 256) * 256)
    tile_m = min(tile_m, _round_up(M, 256))

    Mp = _round_up(M, tile_m)
    if Mp != M:
        x2d = jnp.pad(x2d, ((0, Mp - M), (0, 0)))
    grid = (Mp // tile_m,)

    est = (w_vmem + 2 * tile_m * Kc * 2 + tile_m * N * 4
           + 2 * tile_m * N * 2 + 4 * N * 4)
    vmem_limit = int(min(max(est + est // 2 + (1 << 20), 32 << 20), budget))

    kern = functools.partial(_mm_bn_act_kernel, act=act)
    out = pl.pallas_call(
        kern,
        out_shape=jax.ShapeDtypeStruct((Mp, N), jnp.bfloat16),
        grid=grid,
        in_specs=[
            pl.BlockSpec((tile_m, Kc), lambda i: (i, 0)),
            _resident_spec((Kc, N), 1, sb),
            _resident_spec((1, N), 1, sb),
            _resident_spec((1, N), 1, sb),
        ],
        out_specs=pl.BlockSpec((tile_m, N), lambda i: (i, 0)),
        compiler_params=pltpu.CompilerParams(
            dimension_semantics=("parallel",),
            vmem_limit_bytes=vmem_limit),
    )(x2d, w2d, scale, bias)
    return out[:M] if Mp != M else out


# --------------------------- k x k conv path (s=1) ---------------------------

def _convk_bn_act_kernel(xp_hbm, w_ref, s_ref, b_ref, o_ref, xbuf, sem,
                         *, K, TH, Wo, HO, HI, act, deep):
    p0 = pl.program_id(0)                  # fused (batch, outer-H-chunk) index
    i = pl.program_id(1)                   # inner H-tile index (sequential)
    b = p0 // HO
    h_tile = (p0 % HO) * HI + i
    h0 = h_tile * TH
    THK = TH + K - 1
    slot = i & 1

    def _fetch(row0, s):
        pltpu.make_async_copy(xp_hbm.at[b, pl.ds(row0, THK)],
                              xbuf.at[s], sem.at[s]).start()

    # Prime the double buffer at the start of every inner (sequential) run.
    @pl.when(i == 0)
    def _():
        _fetch(h0, 0)

    # Prefetch the next row band while this one is being computed.
    @pl.when(i + 1 < HI)
    def _():
        _fetch(h0 + TH, (i + 1) & 1)

    pltpu.make_async_copy(xp_hbm.at[b, pl.ds(h0, THK)],
                          xbuf.at[slot], sem.at[slot]).wait()

    # One sublane-shifted kw slice per band (K slices instead of K*K).
    taps = [xbuf[slot, :, kw:kw + Wo, :] for kw in range(K)]  # (THK, Wo, C) each

    acc = None
    if deep:
        # C % 128 == 0: lane-aligned concat -> each dot contracts over K*C,
        # folding the kw tap-sum into the MXU (only K-1 VALU adds remain).
        xcat = taps[0] if K == 1 else jnp.concatenate(taps, axis=-1)
        for kh in range(K):
            t = lax.dot_general(xcat[kh:kh + TH], w_ref[kh],
                                dimension_numbers=(((2,), (0,)), ((), ())),
                                preferred_element_type=jnp.float32)
            acc = t if acc is None else acc + t
    else:
        for kh in range(K):
            for kw in range(K):
                t = lax.dot_general(taps[kw][kh:kh + TH], w_ref[kh, kw],
                                    dimension_numbers=(((2,), (0,)), ((), ())),
                                    preferred_element_type=jnp.float32)
                acc = t if acc is None else acc + t

    y = acc * s_ref[...] + b_ref[...]
    if act:
        y = _hardswish(y)
    o_ref[0] = y.astype(o_ref.dtype)


def _convk_bn_act(x, wk, scale, bias, act, *, K, pad, Ho, Wo, deep, max_th=None):
    """x: (B,H,W,C) NHWC bf16 (unpadded); wk: (K,K*C,N) or (K,K,C,N) bf16."""
    B, H, W, C = x.shape
    N = wk.shape[-1]
    Wp = W + 2 * pad
    budget = _vmem_budget()
    sb = _single_buffer_ok()

    # Per-output-row VMEM footprint: double-buffered input band, the per-kw
    # slices (+ concat copy in the deep path), the f32 accumulator and the
    # double-buffered bf16 output tile.
    cat_mult = 2 * K if deep else K
    row_bytes = (2 * Wp * C * 2 + cat_mult * Wo * C * 2
                 + Wo * N * 4 + 2 * Wo * N * 2)
    w_vmem = int(wk.size) * 2 * (1 if sb else 2)
    avail = max(budget - w_vmem - (4 << 20), 2 << 20)
    th_cap = max(1, min(avail // row_bytes, 256, Ho))
    if max_th is not None:
        th_cap = max(1, min(th_cap, int(max_th)))
    TH = _largest_divisor_at_most(Ho, th_cap)
    if TH < max(8, th_cap // 2) and TH != Ho:
        TH = int(th_cap)                   # pad Ho up instead of a tiny divisor
    n_ht = (Ho + TH - 1) // TH
    Ho_pad = n_ht * TH
    THK = TH + K - 1

    # Single spatial pad: conv padding plus extra bottom rows so every halo'd
    # row band (including the ragged last one) stays in-bounds.
    xpad = jnp.pad(x, ((0, 0), (pad, pad + (Ho_pad - Ho)), (pad, pad), (0, 0)))

    # Fuse an outer H chunk into the parallel axis so both TensorCores get
    # work even at batch 1 (v7x megacore balance).
    HO = 2 if (B == 1 and n_ht >= 2 and n_ht % 2 == 0) else 1
    HI = n_ht // HO
    grid = (B * HO, HI)

    est = (w_vmem + 4 * N * 4
           + 2 * THK * Wp * C * 2
           + TH * (cat_mult * Wo * C * 2 + Wo * N * 4)
           + 2 * TH * Wo * N * 2)
    vmem_limit = int(min(max(est + est // 2 + (2 << 20), 32 << 20), budget))

    kern = functools.partial(_convk_bn_act_kernel, K=K, TH=TH, Wo=Wo,
                             HO=HO, HI=HI, act=act, deep=deep)
    return pl.pallas_call(
        kern,
        out_shape=jax.ShapeDtypeStruct((B, Ho_pad, Wo, N), jnp.bfloat16),
        grid=grid,
        in_specs=[
            pl.BlockSpec(memory_space=pl.ANY),        # padded input stays in HBM
            _resident_spec(wk.shape, 2, sb),
            _resident_spec((1, N), 2, sb),
            _resident_spec((1, N), 2, sb),
        ],
        out_specs=pl.BlockSpec(
            (1, TH, Wo, N),
            lambda g, i: (g // HO, (g % HO) * HI + i, 0, 0)),
        scratch_shapes=[
            pltpu.VMEM((2, THK, Wp, C), jnp.bfloat16),
            pltpu.SemaphoreType.DMA((2,)),
        ],
        compiler_params=pltpu.CompilerParams(
            dimension_semantics=("parallel", "arbitrary"),
            vmem_limit_bytes=vmem_limit),
    )(xpad, wk, scale, bias)


# ------------------------------- module glue ---------------------------------

def conv_forward(x_nchw, weight, gamma, beta, mean, var, *,
                 stride=1, padding=None, groups=1, act=True, max_th=None):
    """PyTorch Conv.forward: Hardswish(BatchNorm2d(Conv2d(x, bias=False)))."""
    B, c1, H, W = x_nchw.shape
    c2, c1g, kh_, kw_ = weight.shape
    assert kh_ == kw_, "only square kernels supported"
    k = int(kh_)
    p = autopad(k, padding)
    if groups != 1 or c1g != c1:
        # TODO(synk): grouped / depthwise convolutions are not lowered to Pallas.
        raise NotImplementedError("groups != 1 not supported")

    # TODO(synk): training-mode BatchNorm batch statistics are not reproduced;
    # running stats are folded into per-channel scale/bias (inference mode).
    scale, bias = _fold_bn(gamma, beta, mean, var)

    # Only the output/N side is padded to lane-dense multiples of 128 (unmasked
    # vector stores); the input channel dim stays at c1 so thin-channel layers
    # do not inflate HBM reads.
    Np = _round_up(c2, _LANE)
    scale_p = jnp.pad(scale, (0, Np - c2)).reshape(1, Np)
    bias_p = jnp.pad(bias, (0, Np - c2)).reshape(1, Np)

    x = jnp.transpose(x_nchw, (0, 2, 3, 1)).astype(jnp.bfloat16)    # NHWC bf16

    if k == 1:
        if p:
            x = jnp.pad(x, ((0, 0), (p, p), (p, p), (0, 0)))
        if stride != 1:
            x = x[:, ::stride, ::stride, :]
        Bo, Ho, Wo, _ = x.shape
        x2d = x.reshape(Bo * Ho * Wo, c1)
        w2d = jnp.pad(weight[:, :, 0, 0].T,
                      ((0, 0), (0, Np - c2))).astype(jnp.bfloat16)
        out2d = _matmul_bn_act(x2d, w2d, scale_p, bias_p, act)      # (M, Np) bf16
        out = out2d[:, :c2].reshape(Bo, Ho, Wo, c2)
    elif stride == 1:
        Ho, Wo = H + 2 * p - k + 1, W + 2 * p - k + 1
        deep = (c1 % _LANE == 0)
        wk4 = jnp.transpose(weight, (2, 3, 1, 0))                   # (k,k,c1,c2)
        wk4 = jnp.pad(wk4, ((0, 0), (0, 0), (0, 0), (0, Np - c2)))
        if deep:
            # (kh, kw*c1 + c, n): matches the in-kernel kw concat ordering.
            wk4 = wk4.reshape(k, k * c1, Np)
        out4 = _convk_bn_act(x, wk4.astype(jnp.bfloat16), scale_p, bias_p, act,
                             K=k, pad=p, Ho=Ho, Wo=Wo, deep=deep, max_th=max_th)
        out = out4[:, :Ho, :, :c2]
    else:
        # TODO(synk): k > 1 with stride > 1 not implemented in the Pallas path.
        raise NotImplementedError("k > 1 with stride > 1 not supported")

    return jnp.transpose(out, (0, 3, 1, 2)).astype(x_nchw.dtype)    # NCHW


# ---------------------------------- test --------------------------------------

def _make_bn(key, c):
    k1, k2, k3, k4 = jax.random.split(key, 4)
    gamma = 1.0 + 0.1 * jax.random.normal(k1, (c,), jnp.float32)
    beta = 0.1 * jax.random.normal(k2, (c,), jnp.float32)
    mean = 0.1 * jax.random.normal(k3, (c,), jnp.float32)
    var = 0.9 + 0.2 * jnp.abs(jax.random.normal(k4, (c,), jnp.float32))
    return gamma, beta, mean, var


def _ref_conv(x, w, gamma, beta, mean, var, stride, padding, act):
    y = jax.lax.conv_general_dilated(
        x, w, window_strides=(stride, stride),
        padding=[(padding, padding), (padding, padding)],
        dimension_numbers=("NCHW", "OIHW", "NCHW"))
    scale = gamma / jnp.sqrt(var + _BN_EPS)
    bias = beta - mean * scale
    y = y * scale[None, :, None, None] + bias[None, :, None, None]
    if act:
        y = y * jnp.clip(y + 3.0, 0.0, 6.0) / 6.0
    return y


if __name__ == "__main__":
    key = jax.random.PRNGKey(0)
    kx, kw1, kw3, kb1, kb3, kxd, kwd, kbd = jax.random.split(key, 8)

    B, c1, c2, H, W = 2, 4, 8, 16, 16
    x = jax.random.normal(kx, (B, c1, H, W), jnp.float32)

    # Conv(c1, c2, k=1)  -- the module default (1x1 conv + BN + Hardswish)
    w1 = 0.2 * jax.random.normal(kw1, (c2, c1, 1, 1), jnp.float32)
    bn1 = _make_bn(kb1, c2)
    out1 = conv_forward(x, w1, *bn1)
    jax.block_until_ready(out1)
    ref1 = _ref_conv(x, w1, *bn1, stride=1, padding=0, act=True)
    np.testing.assert_allclose(np.asarray(out1), np.asarray(ref1),
                               rtol=5e-2, atol=5e-2)
    assert out1.shape == (B, c2, H, W)

    # Conv(c1, c2, k=3)  -- 3x3 conv (pad=1), thin-channel (shallow) path
    w3 = 0.2 * jax.random.normal(kw3, (c2, c1, 3, 3), jnp.float32)
    bn3 = _make_bn(kb3, c2)
    out3 = conv_forward(x, w3, *bn3)
    jax.block_until_ready(out3)
    ref3 = _ref_conv(x, w3, *bn3, stride=1, padding=1, act=True)
    np.testing.assert_allclose(np.asarray(out3), np.asarray(ref3),
                               rtol=5e-2, atol=5e-2)
    assert out3.shape == (B, c2, H, W)

    # Conv(128, 128, k=3) -- lane-aligned deep-contraction path; max_th forces
    # several row bands so the double-buffered DMA, ragged-Ho padding and the
    # batch-1 megacore split are all exercised.
    cd = 128
    xd = jax.random.normal(kxd, (1, cd, 16, 16), jnp.float32)
    wd = 0.05 * jax.random.normal(kwd, (cd, cd, 3, 3), jnp.float32)
    bnd = _make_bn(kbd, cd)
    outd = conv_forward(xd, wd, *bnd, max_th=5)
    jax.block_until_ready(outd)
    refd = _ref_conv(xd, wd, *bnd, stride=1, padding=1, act=True)
    np.testing.assert_allclose(np.asarray(outd), np.asarray(refd),
                               rtol=5e-2, atol=5e-2)
    assert outd.shape == (1, cd, 16, 16)

    print("KERNEL_OK")
</pallas_src>

<mosaic_0001>
module attributes {stable_mosaic.version = 11 : i64} {
  func.func @_probe(%arg0: i32, %arg1: memref<8x128xf32, #tpu.memory_space<vmem>>, %arg2: memref<8x128xf32, #tpu.memory_space<vmem>>, %arg3: memref<8x128xf32, #tpu.memory_space<vmem>>) attributes {dimension_semantics = [#tpu.dimension_semantics<arbitrary>], iteration_bounds = array<i64: 2>, scalar_prefetch = 0 : i64, scratch_operands = 0 : i64, tpu.core_type = #tpu.core_type<tc>, window_params = [{transform_indices = @transform_0, window_bounds = array<i64: 8, 128>}, {pipeline_mode = #tpu.pipeline_mode<synchronous>, transform_indices = @transform_1, window_bounds = array<i64: 8, 128>}, {transform_indices = @transform_2, window_bounds = array<i64: 8, 128>}]} {
    %c0 = arith.constant 0 : index
    %c0_0 = arith.constant 0 : index
    %0 = vector.load %arg1[%c0, %c0_0] : memref<8x128xf32, #tpu.memory_space<vmem>>, vector<8x128xf32>
    %c0_1 = arith.constant 0 : index
    %c0_2 = arith.constant 0 : index
    %1 = vector.load %arg2[%c0_1, %c0_2] : memref<8x128xf32, #tpu.memory_space<vmem>>, vector<8x128xf32>
    %2 = arith.addf %0, %1 : vector<8x128xf32>
    %c0_3 = arith.constant 0 : index
    %c0_4 = arith.constant 0 : index
    %3 = vector.load %arg3[%c0_3, %c0_4] : memref<8x128xf32, #tpu.memory_space<vmem>>, vector<8x128xf32>
    tpu.vector_store %arg3[%c0_3, %c0_4], %2 {strides = array<i32>} : memref<8x128xf32, #tpu.memory_space<vmem>>, vector<8x128xf32>,
    return
  }
  func.func @transform_0(%arg0: i32) -> (i32, i32) {
    %c0_i32 = arith.constant 0 : i32
    %c0_i32_0 = arith.constant 0 : i32
    return %arg0, %c0_i32 : i32, i32
  }
  func.func @transform_1(%arg0: i32) -> (i32, i32) {
    %c0_i32 = arith.constant 0 : i32
    %c0_i32_0 = arith.constant 0 : i32
    %c0_i32_1 = arith.constant 0 : i32
    return %c0_i32, %c0_i32_0 : i32, i32
  }
  func.func @transform_2(%arg0: i32) -> (i32, i32) {
    %c0_i32 = arith.constant 0 : i32
    %c0_i32_0 = arith.constant 0 : i32
    return %arg0, %c0_i32 : i32, i32
  }
}

module attributes {stable_mosaic.version = 11 : i64} {
  func.func @_mm_bn_act_kernel(%arg0: i32, %arg1: memref<512x4xbf16, #tpu.memory_space<vmem>>, %arg2: memref<4x128xbf16, #tpu.memory_space<vmem>>, %arg3: memref<1x128xf32, #tpu.memory_space<vmem>>, %arg4: memref<1x128xf32, #tpu.memory_space<vmem>>, %arg5: memref<512x128xbf16, #tpu.memory_space<vmem>>) attributes {dimension_semantics = [#tpu.dimension_semantics<parallel>], iteration_bounds = array<i64: 1>, scalar_prefetch = 0 : i64, scratch_operands = 0 : i64, tpu.core_type = #tpu.core_type<tc>, window_params = [{transform_indices = @transform_0, window_bounds = array<i64: 512, 4>}, {pipeline_mode = #tpu.pipeline_mode<synchronous>, transform_indices = @transform_1, window_bounds = array<i64: 4, 128>}, {pipeline_mode = #tpu.pipeline_mode<synchronous>, transform_indices = @transform_2, window_bounds = array<i64: 1, 128>}, {pipeline_mode = #tpu.pipeline_mode<synchronous>, transform_indices = @transform_3, window_bounds = array<i64: 1, 128>}, {transform_indices = @transform_4, window_bounds = array<i64: 512, 128>}]} {
    %c0 = arith.constant 0 : index
    %c0_0 = arith.constant 0 : index
    %0 = vector.load %arg1[%c0, %c0_0] : memref<512x4xbf16, #tpu.memory_space<vmem>>, vector<512x4xbf16>
    %c0_1 = arith.constant 0 : index
    %c0_2 = arith.constant 0 : index
    %1 = vector.load %arg2[%c0_1, %c0_2] : memref<4x128xbf16, #tpu.memory_space<vmem>>, vector<4x128xbf16>
    %cst = arith.constant dense<0.000000e+00> : vector<512x128xf32>
    %2 = tpu.matmul %0, %1, %cst {dimension_numbers = #tpu.dot_dimension_numbers<[1], [0], [0], [1], [0, 0, 1, 1], [], []>} : vector<512x4xbf16>, vector<4x128xbf16>, vector<512x128xf32> -> vector<512x128xf32>
    %c0_3 = arith.constant 0 : index
    %c0_4 = arith.constant 0 : index
    %3 = vector.load %arg3[%c0_3, %c0_4] : memref<1x128xf32, #tpu.memory_space<vmem>>, vector<1x128xf32>
    %4 = vector.broadcast %3 : vector<1x128xf32> to vector<512x128xf32>
    %5 = arith.mulf %2, %4 : vector<512x128xf32>
    %c0_5 = arith.constant 0 : index
    %c0_6 = arith.constant 0 : index
    %6 = vector.load %arg4[%c0_5, %c0_6] : memref<1x128xf32, #tpu.memory_space<vmem>>, vector<1x128xf32>
    %7 = vector.broadcast %6 : vector<1x128xf32> to vector<512x128xf32>
    %8 = arith.addf %5, %7 : vector<512x128xf32>
    %cst_7 = arith.constant 3.000000e+00 : f32
    %9 = vector.broadcast %cst_7 : f32 to vector<512x128xf32>
    %10 = arith.addf %8, %9 : vector<512x128xf32>
    %cst_8 = arith.constant 0.000000e+00 : f32
    %cst_9 = arith.constant 6.000000e+00 : f32
    %11 = vector.broadcast %cst_8 : f32 to vector<512x128xf32>
    %12 = arith.maximumf %11, %10 : vector<512x128xf32>
    %13 = vector.broadcast %cst_9 : f32 to vector<512x128xf32>
    %14 = arith.minimumf %13, %12 : vector<512x128xf32>
    %15 = arith.mulf %8, %14 : vector<512x128xf32>
    %cst_10 = arith.constant 0.166666672 : f32
    %16 = vector.broadcast %cst_10 : f32 to vector<512x128xf32>
    %17 = arith.mulf %15, %16 : vector<512x128xf32>
    %18 = arith.truncf %17 : vector<512x128xf32> to vector<512x128xbf16>
    %c0_11 = arith.constant 0 : index
    %c0_12 = arith.constant 0 : index
    %19 = vector.load %arg5[%c0_11, %c0_12] : memref<512x128xbf16, #tpu.memory_space<vmem>>, vector<512x128xbf16>
    tpu.vector_store %arg5[%c0_11, %c0_12], %18 {strides = array<i32>} : memref<512x128xbf16, #tpu.memory_space<vmem>>, vector<512x128xbf16>,
    return
  }
  func.func @transform_0(%arg0: i32) -> (i32, i32) {
    %c0_i32 = arith.constant 0 : i32
    %c0_i32_0 = arith.constant 0 : i32
    return %arg0, %c0_i32 : i32, i32
  }
  func.func @transform_1(%arg0: i32) -> (i32, i32) {
    %c0_i32 = arith.constant 0 : i32
    %c0_i32_0 = arith.constant 0 : i32
    %c0_i32_1 = arith.constant 0 : i32
    return %c0_i32, %c0_i32_0 : i32, i32
  }
  func.func @transform_2(%arg0: i32) -> (i32, i32) {
    %c0_i32 = arith.constant 0 : i32
    %c0_i32_0 = arith.constant 0 : i32
    %c0_i32_1 = arith.constant 0 : i32
    return %c0_i32, %c0_i32_0 : i32, i32
  }
  func.func @transform_3(%arg0: i32) -> (i32, i32) {
    %c0_i32 = arith.constant 0 : i32
    %c0_i32_0 = arith.constant 0 : i32
    %c0_i32_1 = arith.constant 0 : i32
    return %c0_i32, %c0_i32_0 : i32, i32
  }
  func.func @transform_4(%arg0: i32) -> (i32, i32) {
    %c0_i32 = arith.constant 0 : i32
    %c0_i32_0 = arith.constant 0 : i32
    return %arg0, %c0_i32 : i32, i32
  }
}

</mosaic_0001>

<llo_original>
// kernel: tpu_custom_call.1
$region0: #{tpu_custom_call.1}
  #allocation0 [shape = 'u32[]', space=smem, size = 0x4, offset = 0x4, fixed_abs, tag = 'smem constant byte address 0x4 - core index']
  #allocation1 [shape = 'u32[144,128]{1,0:T(1,128)}', space=vmem, size = 0x12000, scoped, tag = 'internal scratch']
  %s0 = inlined_call_operand.hbm [shape: f32[16,128], index: 0, kind: input, shape index: {}]
  %s1 = inlined_call_operand.hbm [shape: f32[8,128], index: 1, kind: input, shape index: {}]
  %s2 = inlined_call_operand.hbm [shape: f32[16,128], index: 2, kind: output, shape index: {}]
  %s3 = sld [smem:[#allocation0]]
  $region49: #{tpu_custom_call.1} parent=0
    _
  %s5 = ssub.s32 1, %s3
  %s6 = scalar_select 0, %s5, %s3
  $region1: #{tpu_custom_call.1} parent=0
    #allocation2 [shape = 'u8[8192]{0}', space=vmem, size = 0x2000, scoped, tag = 'input window, operand 0']
    #allocation3 [shape = 's32[2]{0}', space=sflag, size = 0x8, scoped, tag = 'scoped memory for tpu_custom_call.1']
    #allocation4 [shape = 's32[2]{0}', space=sflag, size = 0x8, scoped, tag = 'scoped memory for tpu_custom_call.1']
    #allocation5 [shape = 'u8[4096]{0}', space=vmem, size = 0x1000, scoped, tag = 'input window, operand 1, single buffered']
    #allocation6 [shape = 's32[1]{0}', space=sflag, size = 0x4, scoped, tag = 'scoped memory for tpu_custom_call.1']
    #allocation7 [shape = 'u8[8192]{0}', space=vmem, size = 0x2000, scoped, tag = 'output window, operand 0']
    %7 = vsyncpa [#allocation3], 0
    %s8 = scalar_lea.sflag [#allocation3], 1
    %9 = vsyncpa %s8, 0
    %10 = vsyncpa [#allocation6], 0
    %11 = vsyncpa [#allocation4], 0
    %s12 = scalar_lea.sflag [#allocation4], 1
    %13 = vsyncpa %s12, 0
    loop: start=0, step=1, limit=4
    $region2: #{tpu_custom_call.1} parent=1 // loop_pre_header
      _
    $region3: #{tpu_custom_call.1} parent=1 // loop_header
      %s15 = sphi 0, %s19
      %p16 = scmp.ge.s32.totalorder %s15, 4
      %s25 = sphi 0, %s27
      %s28 = sphi 0, %s25
      %s29 = sphi 0, %s28
      %s45 = sphi 0, %s29
      %s49 = sphi 0, %s49
      %s51 = sphi 0, %s49
      %s52 = sphi 0, %s51
      %s66 = sphi 0, %s52
      %s72 = sphi 0, %s74
      %s75 = sphi 0, %s72
      %s76 = sphi 0, %s75
      %s92 = sphi 0, %s76
    $region4: #{tpu_custom_call.1} parent=1 // loop_header_branch
      %18 = sbr.rel (%p16) target = $region8
    $region5: #{tpu_custom_call.1} parent=1 // loop_body
      %s20 = ssub.s32 %s15, 1
      %s21 = ssub.s32 %s15, 2
      %s22 = sadd.s32 %s15, 1
      %s23 = ssub.s32 %s15, %s22
      %p24 = scmp.eq.s32.totalorder %s23, 0
      %s26 = sadd.s32 %s25, 1
      %s27 = scalar_select %p24, %s25, %s26
      %p30 = pneg %p24
      %p31 = scmp.eq.s32.totalorder %s15, 1
      %p32 = por %p30, %p31
      %p33 = scmp.ne.s32.totalorder %s25, %s28
      %p34 = scmp.eq.s32.totalorder %s15, 0
      %p35 = por %p33, %p34
      %p36 = scmp.ne.s32.totalorder %s25, %s28
      %p37 = scmp.eq.s32.totalorder %s20, 1
      %p38 = por %p36, %p37
      %p39 = scmp.ne.s32.totalorder %s28, %s29
      %p40 = scmp.eq.s32.totalorder %s20, 0
      %p41 = por %p39, %p40
      %p42 = scmp.ne.s32.totalorder %s28, %s29
      %p43 = scmp.eq.s32.totalorder %s21, 1
      %p44 = por %p42, %p43
      %p46 = scmp.ne.s32.totalorder %s29, %s45
      %p47 = scmp.eq.s32.totalorder %s21, 0
      %p48 = por %p46, %p47
      %s50 = sadd.s32 %s49, 1
      %p53 = scmp.eq.s32.totalorder %s15, 1
      %p54 = scmp.ne.s32.totalorder %s49, %s51
      %p55 = scmp.eq.s32.totalorder %s15, 0
      %p56 = por %p54, %p55
      %p57 = scmp.ne.s32.totalorder %s49, %s51
      %p58 = scmp.eq.s32.totalorder %s20, 1
      %p59 = por %p57, %p58
      %p60 = scmp.ne.s32.totalorder %s51, %s52
      %p61 = scmp.eq.s32.totalorder %s20, 0
      %p62 = por %p60, %p61
      %p63 = scmp.ne.s32.totalorder %s51, %s52
      %p64 = scmp.eq.s32.totalorder %s21, 1
      %p65 = por %p63, %p64
      %p67 = scmp.ne.s32.totalorder %s52, %s66
      %p68 = scmp.eq.s32.totalorder %s21, 0
      %p69 = por %p67, %p68
      %s70 = ssub.s32 %s15, %s22
      %p71 = scmp.eq.s32.totalorder %s70, 0
      %s73 = sadd.s32 %s72, 1
      %s74 = scalar_select %p71, %s72, %s73
      %p77 = pneg %p71
      %p78 = scmp.eq.s32.totalorder %s15, 1
      %p79 = por %p77, %p78
      %p80 = scmp.ne.s32.totalorder %s72, %s75
      %p81 = scmp.eq.s32.totalorder %s15, 0
      %p82 = por %p80, %p81
      %p83 = scmp.ne.s32.totalorder %s72, %s75
      %p84 = scmp.eq.s32.totalorder %s20, 1
      %p85 = por %p83, %p84
      %p86 = scmp.ne.s32.totalorder %s75, %s76
      %p87 = scmp.eq.s32.totalorder %s20, 0
      %p88 = por %p86, %p87
      %p89 = scmp.ne.s32.totalorder %s75, %s76
      %p90 = scmp.eq.s32.totalorder %s21, 1
      %p91 = por %p89, %p90
      %p93 = scmp.ne.s32.totalorder %s76, %s92
      %p94 = scmp.eq.s32.totalorder %s21, 0
      %p95 = por %p93, %p94
      %p96 = scmp.le.s32.totalorder 1, %s15
      %p97 = scmp.lt.s32.totalorder %s15, 3
      %p98 = pnand %p96, %p97
      %p99 = pneg %p98
      // Predicated region
      $region9: #{tpu_custom_call.1} parent=5 // pred_check
        _
      $region10: #{tpu_custom_call.1} parent=5 // pred_check_branch
        %101 = sbr.rel (%p98) target = $region12
      $region11: #{tpu_custom_call.1} parent=5 // pred_region
        %s102 = ssub.s32 %s15, 1
        // Predicated region
        $region13: #{tpu_custom_call.1} parent=11 // pred_check
          %p103 = pneg %p62
        $region14: #{tpu_custom_call.1} parent=11 // pred_check_branch
          %105 = sbr.rel (%p103) target = $region16
        $region15: #{tpu_custom_call.1} parent=11 // pred_region
          %s107 = ssub.s32 128, 128
          %108 = vsyncadd [#allocation6], %s107
          %s110 = sshll.u32 [#allocation5], 4
          %s111 = int_to_ptr.vmem [resolvable:$true] %s110
          %113 = dma.hbm_to_vmem [thread:$0]  %s1, 128, %s111, [#allocation6]
        $region16: #{tpu_custom_call.1} parent=11 // pred_fallthru
          _
      $region12: #{tpu_custom_call.1} parent=5 // pred_fallthru
        _
      %p114 = scmp.lt.s32.totalorder %s15, 2
      // Predicated region
      $region17: #{tpu_custom_call.1} parent=5 // pred_check
        %p115 = pneg %p114
      $region18: #{tpu_custom_call.1} parent=5 // pred_check_branch
        %117 = sbr.rel (%p115) target = $region20
      $region19: #{tpu_custom_call.1} parent=5 // pred_region
        // Predicated region
        $region21: #{tpu_custom_call.1} parent=19 // pred_check
          %p118 = pneg %p35
        $region22: #{tpu_custom_call.1} parent=19 // pred_check_branch
          %120 = sbr.rel (%p118) target = $region24
        $region23: #{tpu_custom_call.1} parent=19 // pred_region
          %s121 = sand.u32 %s25, 1
          %s122 = scalar_lea.sflag [#allocation3], %s121
          %s123 = sand.u32 %s25, 1
          %s124 = smul.addr %s123, 8
          %s125 = scalar_lea.vmem [#allocation2], %s124
          %s127 = ssub.s32 128, 128
          %128 = vsyncadd %s122, %s127
          %s129 = smul.addr %s15, 128
          %s130 = scalar_lea.hbm %s0, %s129
          %s132 = sshll.u32 %s125, 4
          %s133 = int_to_ptr.vmem [resolvable:$true] %s132
          %135 = dma.hbm_to_vmem [thread:$0]  %s130, 128, %s133, %s122
        $region24: #{tpu_custom_call.1} parent=19 // pred_fallthru
          _
      $region20: #{tpu_custom_call.1} parent=5 // pred_fallthru
        _
      %p136 = scmp.le.s32.totalorder 1, %s15
      %p137 = scmp.lt.s32.totalorder %s15, 3
      %p138 = pnand %p136, %p137
      %p139 = pneg %p138
      // Predicated region
      $region25: #{tpu_custom_call.1} parent=5 // pred_check
        _
      $region26: #{tpu_custom_call.1} parent=5 // pred_check_branch
        %141 = sbr.rel (%p138) target = $region28
      $region27: #{tpu_custom_call.1} parent=5 // pred_region
        %s142 = ssub.s32 %s15, 1
        %s143 = sand.u32 %s28, 1
        %s144 = scalar_lea.sflag [#allocation3], %s143
        %s145 = sand.u32 %s28, 1
        %s146 = smul.addr %s145, 8
        %s147 = scalar_lea.vmem [#allocation2], %s146
        // Predicated region
        $region29: #{tpu_custom_call.1} parent=27 // pred_check
          %p148 = pneg %p41
        $region30: #{tpu_custom_call.1} parent=27 // pred_check_branch
          %150 = sbr.rel (%p148) target = $region32
        $region31: #{tpu_custom_call.1} parent=27 // pred_region
          %151 = dma.done %s144, 128
        $region32: #{tpu_custom_call.1} parent=27 // pred_fallthru
          _
        // Predicated region
        $region33: #{tpu_custom_call.1} parent=27 // pred_check
          %p152 = pneg %p62
        $region34: #{tpu_custom_call.1} parent=27 // pred_check_branch
          %154 = sbr.rel (%p152) target = $region36
        $region35: #{tpu_custom_call.1} parent=27 // pred_region
          %155 = dma.done [#allocation6], 128
        $region36: #{tpu_custom_call.1} parent=27 // pred_fallthru
          _
        %s156 = sand.u32 %s28, 1
        %s157 = scalar_lea.sflag [#allocation3], %s156
        %s158 = sand.u32 %s28, 1
        %s159 = smul.addr %s158, 8
        %s160 = scalar_lea.vmem [#allocation2], %s159
        %p161 = pneg %p41
        %p162 = pneg %p38
        %p163 = pneg %p62
        %p164 = pneg %p59
        %p165 = pneg %p88
        %p166 = pneg %p85
        %s167 = sand.u32 %s75, 1
        %s168 = scalar_lea.sflag [#allocation4], %s167
        %s169 = sand.u32 %s75, 1
        %s170 = smul.addr %s169, 8
        %s171 = scalar_lea.vmem [#allocation7], %s170
        %v172 = vld [vmem:[%s147] sm:$0xff]
        %v173 = vld [vmem:[#allocation5] sm:$0xff]
        %v174 = vadd.f32 %v172, %v173
        %175 = vst [vmem:[%s171] sm:$0xff] %v174
        %s176 = sand.u32 %s75, 1
        %s177 = scalar_lea.sflag [#allocation4], %s176
        %s178 = sand.u32 %s75, 1
        %s179 = smul.addr %s178, 8
        %s180 = scalar_lea.vmem [#allocation7], %s179
        // Predicated region
        $region37: #{tpu_custom_call.1} parent=27 // pred_check
          %p181 = pneg %p85
        $region38: #{tpu_custom_call.1} parent=27 // pred_check_branch
          %183 = sbr.rel (%p181) target = $region40
        $region39: #{tpu_custom_call.1} parent=27 // pred_region
          %s185 = ssub.s32 128, 128
          %186 = vsyncadd %s177, %s185
          %s187 = smul.addr %s20, 128
          %s188 = scalar_lea.hbm %s2, %s187
          %s190 = sshll.u32 %s180, 4
          %s191 = int_to_ptr.vmem [resolvable:$true] %s190
          %193 = dma.vmem_to_hbm [thread:$0]  %s191, 128, %s188, %s177
        $region40: #{tpu_custom_call.1} parent=27 // pred_fallthru
          _
      $region28: #{tpu_custom_call.1} parent=5 // pred_fallthru
        _
      %p194 = scmp.le.s32.totalorder 2, %s15
      // Predicated region
      $region41: #{tpu_custom_call.1} parent=5 // pred_check
        %p195 = pneg %p194
      $region42: #{tpu_custom_call.1} parent=5 // pred_check_branch
        %197 = sbr.rel (%p195) target = $region44
      $region43: #{tpu_custom_call.1} parent=5 // pred_region
        %s198 = ssub.s32 %s15, 2
        // Predicated region
        $region45: #{tpu_custom_call.1} parent=43 // pred_check
          %p199 = pneg %p91
        $region46: #{tpu_custom_call.1} parent=43 // pred_check_branch
          %201 = sbr.rel (%p199) target = $region48
        $region47: #{tpu_custom_call.1} parent=43 // pred_region
          %s202 = sand.u32 %s76, 1
          %s203 = scalar_lea.sflag [#allocation4], %s202
          %s204 = sand.u32 %s76, 1
          %s205 = smul.addr %s204, 8
          %s206 = scalar_lea.vmem [#allocation7], %s205
          %207 = dma.done %s203, 128
        $region48: #{tpu_custom_call.1} parent=43 // pred_fallthru
          _
      $region44: #{tpu_custom_call.1} parent=5 // pred_fallthru
        _
    $region6: #{tpu_custom_call.1} parent=1 // loop_footer
      %s19 = sadd.s32 1, %s15
    $region7: #{tpu_custom_call.1} parent=1 // loop_footer_branch
      %14 = sbr.rel target = $region3
    $region8: #{tpu_custom_call.1} parent=1 // loop_exit
      _
    %208 = vsyncpa [#allocation3], 1
    %s209 = scalar_lea.sflag [#allocation3], 1
    %210 = vsyncpa %s209, 1
    %211 = vsyncpa [#allocation6], 1
    %212 = vsyncpa [#allocation4], 1
    %s213 = scalar_lea.sflag [#allocation4], 1
    %214 = vsyncpa %s213, 1

// kernel: tpu_custom_call.1
$region0: #{tpu_custom_call.1}
  #allocation0 [shape = 'u32[]', space=smem, size = 0x4, offset = 0x4, fixed_abs, tag = 'smem constant byte address 0x4 - core index']
  #allocation1 [shape = 'u32[144,128]{1,0:T(1,128)}', space=vmem, size = 0x12000, scoped, tag = 'internal scratch']
  %s0 = inlined_call_operand.vmem [shape: bf16[512,4], index: 0, kind: input, shape index: {}]
  %s1 = inlined_call_operand.vmem [shape: bf16[4,128], index: 1, kind: input, shape index: {}]
  %s2 = inlined_call_operand.vmem [shape: f32[1,128], index: 2, kind: input, shape index: {}]
  %s3 = inlined_call_operand.vmem [shape: f32[1,128], index: 3, kind: input, shape index: {}]
  %s4 = inlined_call_operand.hbm [shape: bf16[512,128], index: 4, kind: output, shape index: {}]
  %s5 = sld [smem:[#allocation0]]
  $region26: #{tpu_custom_call.1} parent=0
    _
  %s7 = ssub.s32 1, %s5
  %s8 = scalar_select 0, %s7, %s5
  $region1: #{tpu_custom_call.1} parent=0
    #allocation2 [shape = 'u8[131072]{0}', space=vmem, size = 0x20000, scoped, tag = 'output window, operand 0, single buffered']
    #allocation3 [shape = 's32[1]{0}', space=sflag, size = 0x4, scoped, tag = 'scoped memory for tpu_custom_call.1']
    %9 = vsyncpa [#allocation3], 0
    // Predicated region
    $region2: #{tpu_custom_call.1} parent=1 // pred_check
      _
    $region3: #{tpu_custom_call.1} parent=1 // pred_check_branch
      %11 = sbr.rel (0) target = $region5
    $region4: #{tpu_custom_call.1} parent=1 // pred_region
      _
    $region5: #{tpu_custom_call.1} parent=1 // pred_fallthru
      _
    // Predicated region
    $region6: #{tpu_custom_call.1} parent=1 // pred_check
      _
    $region7: #{tpu_custom_call.1} parent=1 // pred_check_branch
      %13 = sbr.rel (0) target = $region9
    $region8: #{tpu_custom_call.1} parent=1 // pred_region
      _
    $region9: #{tpu_custom_call.1} parent=1 // pred_fallthru
      _
    // Predicated region
    $region10: #{tpu_custom_call.1} parent=1 // pred_check
      _
    $region11: #{tpu_custom_call.1} parent=1 // pred_check_branch
      %15 = sbr.rel (0) target = $region13
    $region12: #{tpu_custom_call.1} parent=1 // pred_region
      _
    $region13: #{tpu_custom_call.1} parent=1 // pred_fallthru
      _
    // Predicated region
    $region14: #{tpu_custom_call.1} parent=1 // pred_check
      _
    $region15: #{tpu_custom_call.1} parent=1 // pred_check_branch
      %17 = sbr.rel (0) target = $region17
    $region16: #{tpu_custom_call.1} parent=1 // pred_region
      _
    $region17: #{tpu_custom_call.1} parent=1 // pred_fallthru
      _
    %v19 = vld [vmem:[%s0] sm:$0xf]
    %v20 = vld [vmem:[%s0 + $0x4] sm:$0xf]
    %v21 = vld [vmem:[%s0 + $0x8] sm:$0xf]
    %v22 = vld [vmem:[%s0 + $0xc] sm:$0xf]
    %v23 = vld [vmem:[%s0 + $0x10] sm:$0xf]
    %v24 = vld [vmem:[%s0 + $0x14] sm:$0xf]
    %v25 = vld [vmem:[%s0 + $0x18] sm:$0xf]
    %v26 = vld [vmem:[%s0 + $0x1c] sm:$0xf]
    %v27 = vld [vmem:[%s0 + $0x20] sm:$0xf]
    %v28 = vld [vmem:[%s0 + $0x24] sm:$0xf]
    %v29 = vld [vmem:[%s0 + $0x28] sm:$0xf]
    %v30 = vld [vmem:[%s0 + $0x2c] sm:$0xf]
    %v31 = vld [vmem:[%s0 + $0x30] sm:$0xf]
    %v32 = vld [vmem:[%s0 + $0x34] sm:$0xf]
    %v33 = vld [vmem:[%s0 + $0x38] sm:$0xf]
    %v34 = vld [vmem:[%s0 + $0x3c] sm:$0xf]
    %v35 = vld [vmem:[%s0 + $0x40] sm:$0xf]
    %v36 = vld [vmem:[%s0 + $0x44] sm:$0xf]
    %v37 = vld [vmem:[%s0 + $0x48] sm:$0xf]
    %v38 = vld [vmem:[%s0 + $0x4c] sm:$0xf]
    %v39 = vld [vmem:[%s0 + $0x50] sm:$0xf]
    %v40 = vld [vmem:[%s0 + $0x54] sm:$0xf]
    %v41 = vld [vmem:[%s0 + $0x58] sm:$0xf]
    %v42 = vld [vmem:[%s0 + $0x5c] sm:$0xf]
    %v43 = vld [vmem:[%s0 + $0x60] sm:$0xf]
    %v44 = vld [vmem:[%s0 + $0x64] sm:$0xf]
    %v45 = vld [vmem:[%s0 + $0x68] sm:$0xf]
    %v46 = vld [vmem:[%s0 + $0x6c] sm:$0xf]
    %v47 = vld [vmem:[%s0 + $0x70] sm:$0xf]
    %v48 = vld [vmem:[%s0 + $0x74] sm:$0xf]
    %v49 = vld [vmem:[%s0 + $0x78] sm:$0xf]
    %v50 = vld [vmem:[%s0 + $0x7c] sm:$0xf]
    %v51 = vld [vmem:[%s0 + $0x80] sm:$0xf]
    %v52 = vld [vmem:[%s0 + $0x84] sm:$0xf]
    %v53 = vld [vmem:[%s0 + $0x88] sm:$0xf]
    %v54 = vld [vmem:[%s0 + $0x8c] sm:$0xf]
    %v55 = vld [vmem:[%s0 + $0x90] sm:$0xf]
    %v56 = vld [vmem:[%s0 + $0x94] sm:$0xf]
    %v57 = vld [vmem:[%s0 + $0x98] sm:$0xf]
    %v58 = vld [vmem:[%s0 + $0x9c] sm:$0xf]
    %v59 = vld [vmem:[%s0 + $0xa0] sm:$0xf]
    %v60 = vld [vmem:[%s0 + $0xa4] sm:$0xf]
    %v61 = vld [vmem:[%s0 + $0xa8] sm:$0xf]
    %v62 = vld [vmem:[%s0 + $0xac] sm:$0xf]
    %v63 = vld [vmem:[%s0 + $0xb0] sm:$0xf]
    %v64 = vld [vmem:[%s0 + $0xb4] sm:$0xf]
    %v65 = vld [vmem:[%s0 + $0xb8] sm:$0xf]
    %v66 = vld [vmem:[%s0 + $0xbc] sm:$0xf]
    %v67 = vld [vmem:[%s0 + $0xc0] sm:$0xf]
    %v68 = vld [vmem:[%s0 + $0xc4] sm:$0xf]
    %v69 = vld [vmem:[%s0 + $0xc8] sm:$0xf]
    %v70 = vld [vmem:[%s0 + $0xcc] sm:$0xf]
    %v71 = vld [vmem:[%s0 + $0xd0] sm:$0xf]
    %v72 = vld [vmem:[%s0 + $0xd4] sm:$0xf]
    %v73 = vld [vmem:[%s0 + $0xd8] sm:$0xf]
    %v74 = vld [vmem:[%s0 + $0xdc] sm:$0xf]
    %v75 = vld [vmem:[%s0 + $0xe0] sm:$0xf]
    %v76 = vld [vmem:[%s0 + $0xe4] sm:$0xf]
    %v77 = vld [vmem:[%s0 + $0xe8] sm:$0xf]
    %v78 = vld [vmem:[%s0 + $0xec] sm:$0xf]
    %v79 = vld [vmem:[%s0 + $0xf0] sm:$0xf]
    %v80 = vld [vmem:[%s0 + $0xf4] sm:$0xf]
    %v81 = vld [vmem:[%s0 + $0xf8] sm:$0xf]
    %v82 = vld [vmem:[%s0 + $0xfc] sm:$0xf]
    %v83 = vld [vmem:[%s1] sm:$0x3]
    %v148 = vunpack.c.l.b16 %v19
    %v149 = vunpack.c.l.b16 %v20
    %v150 = vunpack.c.l.b16 %v21
    %v151 = vunpack.c.l.b16 %v22
    %v152 = vunpack.c.l.b16 %v23
    %v153 = vunpack.c.l.b16 %v24
    %v154 = vunpack.c.l.b16 %v25
    %v155 = vunpack.c.l.b16 %v26
    %v156 = vunpack.c.l.b16 %v27
    %v157 = vunpack.c.l.b16 %v28
    %v158 = vunpack.c.l.b16 %v29
    %v159 = vunpack.c.l.b16 %v30
    %v160 = vunpack.c.l.b16 %v31
    %v161 = vunpack.c.l.b16 %v32
    %v162 = vunpack.c.l.b16 %v33
    %v163 = vunpack.c.l.b16 %v34
    %v164 = vunpack.c.l.b16 %v35
    %v165 = vunpack.c.l.b16 %v36
    %v166 = vunpack.c.l.b16 %v37
    %v167 = vunpack.c.l.b16 %v38
    %v168 = vunpack.c.l.b16 %v39
    %v169 = vunpack.c.l.b16 %v40
    %v170 = vunpack.c.l.b16 %v41
    %v171 = vunpack.c.l.b16 %v42
    %v172 = vunpack.c.l.b16 %v43
    %v173 = vunpack.c.l.b16 %v44
    %v174 = vunpack.c.l.b16 %v45
    %v175 = vunpack.c.l.b16 %v46
    %v176 = vunpack.c.l.b16 %v47
    %v177 = vunpack.c.l.b16 %v48
    %v178 = vunpack.c.l.b16 %v49
    %v179 = vunpack.c.l.b16 %v50
    %v180 = vunpack.c.l.b16 %v51
    %v181 = vunpack.c.l.b16 %v52
    %v182 = vunpack.c.l.b16 %v53
    %v183 = vunpack.c.l.b16 %v54
    %v184 = vunpack.c.l.b16 %v55
    %v185 = vunpack.c.l.b16 %v56
    %v186 = vunpack.c.l.b16 %v57
    %v187 = vunpack.c.l.b16 %v58
    %v188 = vunpack.c.l.b16 %v59
    %v189 = vunpack.c.l.b16 %v60
    %v190 = vunpack.c.l.b16 %v61
    %v191 = vunpack.c.l.b16 %v62
    %v192 = vunpack.c.l.b16 %v63
    %v193 = vunpack.c.l.b16 %v64
    %v194 = vunpack.c.l.b16 %v65
    %v195 = vunpack.c.l.b16 %v66
    %v196 = vunpack.c.l.b16 %v67
    %v197 = vunpack.c.l.b16 %v68
    %v198 = vunpack.c.l.b16 %v69
    %v199 = vunpack.c.l.b16 %v70
    %v200 = vunpack.c.l.b16 %v71
    %v201 = vunpack.c.l.b16 %v72
    %v202 = vunpack.c.l.b16 %v73
    %v203 = vunpack.c.l.b16 %v74
    %v204 = vunpack.c.l.b16 %v75
    %v205 = vunpack.c.l.b16 %v76
    %v206 = vunpack.c.l.b16 %v77
    %v207 = vunpack.c.l.b16 %v78
    %v208 = vunpack.c.l.b16 %v79
    %v209 = vunpack.c.l.b16 %v80
    %v210 = vunpack.c.l.b16 %v81
    %v211 = vunpack.c.l.b16 %v82
    %v212 = vpack.c.b16 %v149, %v148
    %v213 = vpack.c.b16 %v151, %v150
    %v214 = vpack.c.b16 %v153, %v152
    %v215 = vpack.c.b16 %v155, %v154
    %v216 = vpack.c.b16 %v157, %v156
    %v217 = vpack.c.b16 %v159, %v158
    %v218 = vpack.c.b16 %v161, %v160
    %v219 = vpack.c.b16 %v163, %v162
    %v220 = vpack.c.b16 %v165, %v164
    %v221 = vpack.c.b16 %v167, %v166
    %v222 = vpack.c.b16 %v169, %v168
    %v223 = vpack.c.b16 %v171, %v170
    %v224 = vpack.c.b16 %v173, %v172
    %v225 = vpack.c.b16 %v175, %v174
    %v226 = vpack.c.b16 %v177, %v176
    %v227 = vpack.c.b16 %v179, %v178
    %v228 = vpack.c.b16 %v181, %v180
    %v229 = vpack.c.b16 %v183, %v182
    %v230 = vpack.c.b16 %v185, %v184
    %v231 = vpack.c.b16 %v187, %v186
    %v232 = vpack.c.b16 %v189, %v188
    %v233 = vpack.c.b16 %v191, %v190
    %v234 = vpack.c.b16 %v193, %v192
    %v235 = vpack.c.b16 %v195, %v194
    %v236 = vpack.c.b16 %v197, %v196
    %v237 = vpack.c.b16 %v199, %v198
    %v238 = vpack.c.b16 %v201, %v200
    %v239 = vpack.c.b16 %v203, %v202
    %v240 = vpack.c.b16 %v205, %v204
    %v241 = vpack.c.b16 %v207, %v206
    %v242 = vpack.c.b16 %v209, %v208
    %v243 = vpack.c.b16 %v211, %v210
    %vm244 = vcmask 31744
    %v246 = vsel %vm244, %v212, 0
    %v249 = vsel %vm244, %v213, 0
    %v252 = vsel %vm244, %v214, 0
    %v255 = vsel %vm244, %v215, 0
    %v258 = vsel %vm244, %v216, 0
    %v261 = vsel %vm244, %v217, 0
    %v264 = vsel %vm244, %v218, 0
    %v267 = vsel %vm244, %v219, 0
    %v270 = vsel %vm244, %v220, 0
    %v273 = vsel %vm244, %v221, 0
    %v276 = vsel %vm244, %v222, 0
    %v279 = vsel %vm244, %v223, 0
    %v282 = vsel %vm244, %v224, 0
    %v285 = vsel %vm244, %v225, 0
    %v288 = vsel %vm244, %v226, 0
    %v291 = vsel %vm244, %v227, 0
    %v294 = vsel %vm244, %v228, 0
    %v297 = vsel %vm244, %v229, 0
    %v300 = vsel %vm244, %v230, 0
    %v303 = vsel %vm244, %v231, 0
    %v306 = vsel %vm244, %v232, 0
    %v309 = vsel %vm244, %v233, 0
    %v312 = vsel %vm244, %v234, 0
    %v315 = vsel %vm244, %v235, 0
    %v318 = vsel %vm244, %v236, 0
    %v321 = vsel %vm244, %v237, 0
    %v324 = vsel %vm244, %v238, 0
    %v327 = vsel %vm244, %v239, 0
    %v330 = vsel %vm244, %v240, 0
    %v333 = vsel %vm244, %v241, 0
    %v336 = vsel %vm244, %v242, 0
    %v339 = vsel %vm244, %v243, 0
    %vm341 = vcmask 1041408
    %v343 = vsel %vm341, %v83, 0
    %345 = vmatprep.subr.bf16.mxu0 0
    %346 = vmatpush1.bf16.msra.mxu0 0
    %347 = vmatprep.subr.bf16.mxu0 0
    %348 = vmatpush1.bf16.msra.mxu0 0
    %349 = vmatprep.subr.bf16.mxu0 0
    %350 = vmatpush1.bf16.msra.mxu0 0
    %351 = vmatprep.subr.bf16.mxu0 0
    %352 = vmatpush1.bf16.msra.mxu0 0
    %353 = vmatprep.subr.bf16.mxu0 0
    %354 = vmatpush1.bf16.msra.mxu0 0
    %355 = vmatprep.subr.bf16.mxu0 0
    %356 = vmatpush1.bf16.msra.mxu0 0
    %357 = vmatprep.subr.bf16.mxu0 0
    %358 = vmatpush1.bf16.msra.mxu0 0
    %359 = vmatprep.subr.bf16.mxu0 0
    %360 = vmatpush1.bf16.msra.mxu0 %v343
    %361 = vmatprep.subr.bf16.mxu0 0
    %362 = vmatpush2.bf16.msra.mxu0 0
    %363 = vmatprep.subr.bf16.mxu0 0
    %364 = vmatpush2.bf16.msra.mxu0 0
    %365 = vmatprep.subr.bf16.mxu0 0
    %366 = vmatpush2.bf16.msra.mxu0 0
    %367 = vmatprep.subr.bf16.mxu0 0
    %368 = vmatpush2.bf16.msra.mxu0 0
    %369 = vmatprep.subr.bf16.mxu0 0
    %370 = vmatpush2.bf16.msra.mxu0 0
    %371 = vmatprep.subr.bf16.mxu0 0
    %372 = vmatpush2.bf16.msra.mxu0 0
    %373 = vmatprep.subr.bf16.mxu0 0
    %374 = vmatpush2.bf16.msra.mxu0 0
    %375 = vmatprep.subr.bf16.mxu0 0
    %376 = vmatpush2.bf16.msra.mxu0 0
    %377 = vmatprep.mubr.bf16.mxu0 0
    %378 = vmatmul.mubr.bf16.gmra.mxu0 %v246
    %v379 = vpop.f32.mrf.mxu0
    %v380 = vadd.f32 0.0, %v379
    %v381 = vpop.f32.mrf.mxu0
    %v382 = vpop.f32.mrf.mxu0
    %v383 = vadd.f32 0.0, %v382
    %v384 = vpop.f32.mrf.mxu0
    %385 = vmatprep.mubr.bf16.mxu0 0
    %386 = vmatmul.mubr.bf16.gmra.mxu0 %v249
    %v387 = vpop.f32.mrf.mxu0
    %v388 = vadd.f32 0.0, %v387
    %v389 = vpop.f32.mrf.mxu0
    %v390 = vpop.f32.mrf.mxu0
    %v391 = vadd.f32 0.0, %v390
    %v392 = vpop.f32.mrf.mxu0
    %393 = vmatprep.mubr.bf16.mxu0 0
    %394 = vmatmul.mubr.bf16.gmra.mxu0 %v252
    %v395 = vpop.f32.mrf.mxu0
    %v396 = vadd.f32 0.0, %v395
    %v397 = vpop.f32.mrf.mxu0
    %v398 = vpop.f32.mrf.mxu0
    %v399 = vadd.f32 0.0, %v398
    %v400 = vpop.f32.mrf.mxu0
    %401 = vmatprep.mubr.bf16.mxu0 0
    %402 = vmatmul.mubr.bf16.gmra.mxu0 %v255
    %v403 = vpop.f32.mrf.mxu0
    %v404 = vadd.f32 0.0, %v403
    %v405 = vpop.f32.mrf.mxu0
    %v406 = vpop.f32.mrf.mxu0
    %v407 = vadd.f32 0.0, %v406
    %v408 = vpop.f32.mrf.mxu0
    %409 = vmatprep.mubr.bf16.mxu0 0
    %410 = vmatmul.mubr.bf16.gmra.mxu0 %v258
    %v411 = vpop.f32.mrf.mxu0
    %v412 = vadd.f32 0.0, %v411
    %v413 = vpop.f32.mrf.mxu0
    %v414 = vpop.f32.mrf.mxu0
    %v415 = vadd.f32 0.0, %v414
    %v416 = vpop.f32.mrf.mxu0
    %417 = vmatprep.mubr.bf16.mxu0 0
    %418 = vmatmul.mubr.bf16.gmra.mxu0 %v261
    %v419 = vpop.f32.mrf.mxu0
    %v420 = vadd.f32 0.0, %v419
    %v421 = vpop.f32.mrf.mxu0
    %v422 = vpop.f32.mrf.mxu0
    %v423 = vadd.f32 0.0, %v422
    %v424 = vpop.f32.mrf.mxu0
    %425 = vmatprep.mubr.bf16.mxu0 0
    %426 = vmatmul.mubr.bf16.gmra.mxu0 %v264
    %v427 = vpop.f32.mrf.mxu0
    %v428 = vadd.f32 0.0, %v427
    %v429 = vpop.f32.mrf.mxu0
    %v430 = vpop.f32.mrf.mxu0
    %v431 = vadd.f32 0.0, %v430
    %v432 = vpop.f32.mrf.mxu0
    %433 = vmatprep.mubr.bf16.mxu0 0
    %434 = vmatmul.mubr.bf16.gmra.mxu0 %v267
    %v435 = vpop.f32.mrf.mxu0
    %v436 = vadd.f32 0.0, %v435
    %v437 = vpop.f32.mrf.mxu0
    %v438 = vpop.f32.mrf.mxu0
    %v439 = vadd.f32 0.0, %v438
    %v440 = vpop.f32.mrf.mxu0
    %441 = vmatprep.mubr.bf16.mxu0 0
    %442 = vmatmul.mubr.bf16.gmra.mxu0 %v270
    %v443 = vpop.f32.mrf.mxu0
    %v444 = vadd.f32 0.0, %v443
    %v445 = vpop.f32.mrf.mxu0
    %v446 = vpop.f32.mrf.mxu0
    %v447 = vadd.f32 0.0, %v446
    %v448 = vpop.f32.mrf.mxu0
    %449 = vmatprep.mubr.bf16.mxu0 0
    %450 = vmatmul.mubr.bf16.gmra.mxu0 %v273
    %v451 = vpop.f32.mrf.mxu0
    %v452 = vadd.f32 0.0, %v451
    %v453 = vpop.f32.mrf.mxu0
    %v454 = vpop.f32.mrf.mxu0
    %v455 = vadd.f32 0.0, %v454
    %v456 = vpop.f32.mrf.mxu0
    %457 = vmatprep.mubr.bf16.mxu0 0
    %458 = vmatmul.mubr.bf16.gmra.mxu0 %v276
    %v459 = vpop.f32.mrf.mxu0
    %v460 = vadd.f32 0.0, %v459
    %v461 = vpop.f32.mrf.mxu0
    %v462 = vpop.f32.mrf.mxu0
    %v463 = vadd.f32 0.0, %v462
    %v464 = vpop.f32.mrf.mxu0
    %465 = vmatprep.mubr.bf16.mxu0 0
    %466 = vmatmul.mubr.bf16.gmra.mxu0 %v279
    %v467 = vpop.f32.mrf.mxu0
    %v468 = vadd.f32 0.0, %v467
    %v469 = vpop.f32.mrf.mxu0
    %v470 = vpop.f32.mrf.mxu0
    %v471 = vadd.f32 0.0, %v470
    %v472 = vpop.f32.mrf.mxu0
    %473 = vmatprep.mubr.bf16.mxu0 0
    %474 = vmatmul.mubr.bf16.gmra.mxu0 %v282
    %v475 = vpop.f32.mrf.mxu0
    %v476 = vadd.f32 0.0, %v475
    %v477 = vpop.f32.mrf.mxu0
    %v478 = vpop.f32.mrf.mxu0
    %v479 = vadd.f32 0.0, %v478
    %v480 = vpop.f32.mrf.mxu0
    %481 = vmatprep.mubr.bf16.mxu0 0
    %482 = vmatmul.mubr.bf16.gmra.mxu0 %v285
    %v483 = vpop.f32.mrf.mxu0
    %v484 = vadd.f32 0.0, %v483
    %v485 = vpop.f32.mrf.mxu0
    %v486 = vpop.f32.mrf.mxu0
    %v487 = vadd.f32 0.0, %v486
    %v488 = vpop.f32.mrf.mxu0
    %489 = vmatprep.mubr.bf16.mxu0 0
    %490 = vmatmul.mubr.bf16.gmra.mxu0 %v288
    %v491 = vpop.f32.mrf.mxu0
    %v492 = vadd.f32 0.0, %v491
    %v493 = vpop.f32.mrf.mxu0
    %v494 = vpop.f32.mrf.mxu0
    %v495 = vadd.f32 0.0, %v494
    %v496 = vpop.f32.mrf.mxu0
    %497 = vmatprep.mubr.bf16.mxu0 0
    %498 = vmatmul.mubr.bf16.gmra.mxu0 %v291
    %v499 = vpop.f32.mrf.mxu0
    %v500 = vadd.f32 0.0, %v499
    %v501 = vpop.f32.mrf.mxu0
    %v502 = vpop.f32.mrf.mxu0
    %v503 = vadd.f32 0.0, %v502
    %v504 = vpop.f32.mrf.mxu0
    %505 = vmatprep.mubr.bf16.mxu0 0
    %506 = vmatmul.mubr.bf16.gmra.mxu0 %v294
    %v507 = vpop.f32.mrf.mxu0
    %v508 = vadd.f32 0.0, %v507
    %v509 = vpop.f32.mrf.mxu0
    %v510 = vpop.f32.mrf.mxu0
    %v511 = vadd.f32 0.0, %v510
    %v512 = vpop.f32.mrf.mxu0
    %513 = vmatprep.mubr.bf16.mxu0 0
    %514 = vmatmul.mubr.bf16.gmra.mxu0 %v297
    %v515 = vpop.f32.mrf.mxu0
    %v516 = vadd.f32 0.0, %v515
    %v517 = vpop.f32.mrf.mxu0
    %v518 = vpop.f32.mrf.mxu0
    %v519 = vadd.f32 0.0, %v518
    %v520 = vpop.f32.mrf.mxu0
    %521 = vmatprep.mubr.bf16.mxu0 0
    %522 = vmatmul.mubr.bf16.gmra.mxu0 %v300
    %v523 = vpop.f32.mrf.mxu0
    %v524 = vadd.f32 0.0, %v523
    %v525 = vpop.f32.mrf.mxu0
    %v526 = vpop.f32.mrf.mxu0
    %v527 = vadd.f32 0.0, %v526
    %v528 = vpop.f32.mrf.mxu0
    %529 = vmatprep.mubr.bf16.mxu0 0
    %530 = vmatmul.mubr.bf16.gmra.mxu0 %v303
    %v531 = vpop.f32.mrf.mxu0
    %v532 = vadd.f32 0.0, %v531
    %v533 = vpop.f32.mrf.mxu0
    %v534 = vpop.f32.mrf.mxu0
    %v535 = vadd.f32 0.0, %v534
    %v536 = vpop.f32.mrf.mxu0
    %537 = vmatprep.mubr.bf16.mxu0 0
    %538 = vmatmul.mubr.bf16.gmra.mxu0 %v306
    %v539 = vpop.f32.mrf.mxu0
    %v540 = vadd.f32 0.0, %v539
    %v541 = vpop.f32.mrf.mxu0
    %v542 = vpop.f32.mrf.mxu0
    %v543 = vadd.f32 0.0, %v542
    %v544 = vpop.f32.mrf.mxu0
    %545 = vmatprep.mubr.bf16.mxu0 0
    %546 = vmatmul.mubr.bf16.gmra.mxu0 %v309
    %v547 = vpop.f32.mrf.mxu0
    %v548 = vadd.f32 0.0, %v547
    %v549 = vpop.f32.mrf.mxu0
    %v550 = vpop.f32.mrf.mxu0
    %v551 = vadd.f32 0.0, %v550
    %v552 = vpop.f32.mrf.mxu0
    %553 = vmatprep.mubr.bf16.mxu0 0
    %554 = vmatmul.mubr.bf16.gmra.mxu0 %v312
    %v555 = vpop.f32.mrf.mxu0
    %v556 = vadd.f32 0.0, %v555
    %v557 = vpop.f32.mrf.mxu0
    %v558 = vpop.f32.mrf.mxu0
    %v559 = vadd.f32 0.0, %v558
    %v560 = vpop.f32.mrf.mxu0
    %561 = vmatprep.mubr.bf16.mxu0 0
    %562 = vmatmul.mubr.bf16.gmra.mxu0 %v315
    %v563 = vpop.f32.mrf.mxu0
    %v564 = vadd.f32 0.0, %v563
    %v565 = vpop.f32.mrf.mxu0
    %v566 = vpop.f32.mrf.mxu0
    %v567 = vadd.f32 0.0, %v566
    %v568 = vpop.f32.mrf.mxu0
    %569 = vmatprep.mubr.bf16.mxu0 0
    %570 = vmatmul.mubr.bf16.gmra.mxu0 %v318
    %v571 = vpop.f32.mrf.mxu0
    %v572 = vadd.f32 0.0, %v571
    %v573 = vpop.f32.mrf.mxu0
    %v574 = vpop.f32.mrf.mxu0
    %v575 = vadd.f32 0.0, %v574
    %v576 = vpop.f32.mrf.mxu0
    %577 = vmatprep.mubr.bf16.mxu0 0
    %578 = vmatmul.mubr.bf16.gmra.mxu0 %v321
    %v579 = vpop.f32.mrf.mxu0
    %v580 = vadd.f32 0.0, %v579
    %v581 = vpop.f32.mrf.mxu0
    %v582 = vpop.f32.mrf.mxu0
    %v583 = vadd.f32 0.0, %v582
    %v584 = vpop.f32.mrf.mxu0
    %585 = vmatprep.mubr.bf16.mxu0 0
    %586 = vmatmul.mubr.bf16.gmra.mxu0 %v324
    %v587 = vpop.f32.mrf.mxu0
    %v588 = vadd.f32 0.0, %v587
    %v589 = vpop.f32.mrf.mxu0
    %v590 = vpop.f32.mrf.mxu0
    %v591 = vadd.f32 0.0, %v590
    %v592 = vpop.f32.mrf.mxu0
    %593 = vmatprep.mubr.bf16.mxu0 0
    %594 = vmatmul.mubr.bf16.gmra.mxu0 %v327
    %v595 = vpop.f32.mrf.mxu0
    %v596 = vadd.f32 0.0, %v595
    %v597 = vpop.f32.mrf.mxu0
    %v598 = vpop.f32.mrf.mxu0
    %v599 = vadd.f32 0.0, %v598
    %v600 = vpop.f32.mrf.mxu0
    %601 = vmatprep.mubr.bf16.mxu0 0
    %602 = vmatmul.mubr.bf16.gmra.mxu0 %v330
    %v603 = vpop.f32.mrf.mxu0
    %v604 = vadd.f32 0.0, %v603
    %v605 = vpop.f32.mrf.mxu0
    %v606 = vpop.f32.mrf.mxu0
    %v607 = vadd.f32 0.0, %v606
    %v608 = vpop.f32.mrf.mxu0
    %609 = vmatprep.mubr.bf16.mxu0 0
    %610 = vmatmul.mubr.bf16.gmra.mxu0 %v333
    %v611 = vpop.f32.mrf.mxu0
    %v612 = vadd.f32 0.0, %v611
    %v613 = vpop.f32.mrf.mxu0
    %v614 = vpop.f32.mrf.mxu0
    %v615 = vadd.f32 0.0, %v614
    %v616 = vpop.f32.mrf.mxu0
    %617 = vmatprep.mubr.bf16.mxu0 0
    %618 = vmatmul.mubr.bf16.gmra.mxu0 %v336
    %v619 = vpop.f32.mrf.mxu0
    %v620 = vadd.f32 0.0, %v619
    %v621 = vpop.f32.mrf.mxu0
    %v622 = vpop.f32.mrf.mxu0
    %v623 = vadd.f32 0.0, %v622
    %v624 = vpop.f32.mrf.mxu0
    %625 = vmatprep.mubr.bf16.mxu0 0
    %626 = vmatmul.mubr.bf16.gmra.mxu0 %v339
    %v627 = vpop.f32.mrf.mxu0
    %v628 = vadd.f32 0.0, %v627
    %v629 = vpop.f32.mrf.mxu0
    %v630 = vpop.f32.mrf.mxu0
    %v631 = vadd.f32 0.0, %v630
    %v632 = vpop.f32.mrf.mxu0
    %633 = vdwg.mxu0
    %v634 = vld [vmem:[%s2] sm:$0x1]
    %v636 = vlaneseq
    %v637 = vshrl.u32 %v636, 7
    %v638 = vsub.s32 0, %v637
    %v639 = vrot.slane %v634, %v638
    %v641 = vmul.f32 %v380, %v639
    %v642 = vmul.f32 %v383, %v639
    %v643 = vmul.f32 %v388, %v639
    %v644 = vmul.f32 %v391, %v639
    %v645 = vmul.f32 %v396, %v639
    %v646 = vmul.f32 %v399, %v639
    %v647 = vmul.f32 %v404, %v639
    %v648 = vmul.f32 %v407, %v639
    %v649 = vmul.f32 %v412, %v639
    %v650 = vmul.f32 %v415, %v639
    %v651 = vmul.f32 %v420, %v639
    %v652 = vmul.f32 %v423, %v639
    %v653 = vmul.f32 %v428, %v639
    %v654 = vmul.f32 %v431, %v639
    %v655 = vmul.f32 %v436, %v639
    %v656 = vmul.f32 %v439, %v639
    %v657 = vmul.f32 %v444, %v639
    %v658 = vmul.f32 %v447, %v639
    %v659 = vmul.f32 %v452, %v639
    %v660 = vmul.f32 %v455, %v639
    %v661 = vmul.f32 %v460, %v639
    %v662 = vmul.f32 %v463, %v639
    %v663 = vmul.f32 %v468, %v639
    %v664 = vmul.f32 %v471, %v639
    %v665 = vmul.f32 %v476, %v639
    %v666 = vmul.f32 %v479, %v639
    %v667 = vmul.f32 %v484, %v639
    %v668 = vmul.f32 %v487, %v639
    %v669 = vmul.f32 %v492, %v639
    %v670 = vmul.f32 %v495, %v639
    %v671 = vmul.f32 %v500, %v639
    %v672 = vmul.f32 %v503, %v639
    %v673 = vmul.f32 %v508, %v639
    %v674 = vmul.f32 %v511, %v639
    %v675 = vmul.f32 %v516, %v639
    %v676 = vmul.f32 %v519, %v639
    %v677 = vmul.f32 %v524, %v639
    %v678 = vmul.f32 %v527, %v639
    %v679 = vmul.f32 %v532, %v639
    %v680 = vmul.f32 %v535, %v639
    %v681 = vmul.f32 %v540, %v639
    %v682 = vmul.f32 %v543, %v639
    %v683 = vmul.f32 %v548, %v639
    %v684 = vmul.f32 %v551, %v639
    %v685 = vmul.f32 %v556, %v639
    %v686 = vmul.f32 %v559, %v639
    %v687 = vmul.f32 %v564, %v639
    %v688 = vmul.f32 %v567, %v639
    %v689 = vmul.f32 %v572, %v639
    %v690 = vmul.f32 %v575, %v639
    %v691 = vmul.f32 %v580, %v639
    %v692 = vmul.f32 %v583, %v639
    %v693 = vmul.f32 %v588, %v639
    %v694 = vmul.f32 %v591, %v639
    %v695 = vmul.f32 %v596, %v639
    %v696 = vmul.f32 %v599, %v639
    %v697 = vmul.f32 %v604, %v639
    %v698 = vmul.f32 %v607, %v639
    %v699 = vmul.f32 %v612, %v639
    %v700 = vmul.f32 %v615, %v639
    %v701 = vmul.f32 %v620, %v639
    %v702 = vmul.f32 %v623, %v639
    %v703 = vmul.f32 %v628, %v639
    %v704 = vmul.f32 %v631, %v639
    %v705 = vld [vmem:[%s3] sm:$0x1]
    %v707 = vlaneseq
    %v708 = vshrl.u32 %v707, 7
    %v709 = vsub.s32 0, %v708
    %v710 = vrot.slane %v705, %v709
    %v712 = vadd.f32 %v641, %v710
    %v713 = vadd.f32 %v642, %v710
    %v714 = vadd.f32 %v643, %v710
    %v715 = vadd.f32 %v644, %v710
    %v716 = vadd.f32 %v645, %v710
    %v717 = vadd.f32 %v646, %v710
    %v718 = vadd.f32 %v647, %v710
    %v719 = vadd.f32 %v648, %v710
    %v720 = vadd.f32 %v649, %v710
    %v721 = vadd.f32 %v650, %v710
    %v722 = vadd.f32 %v651, %v710
    %v723 = vadd.f32 %v652, %v710
    %v724 = vadd.f32 %v653, %v710
    %v725 = vadd.f32 %v654, %v710
    %v726 = vadd.f32 %v655, %v710
    %v727 = vadd.f32 %v656, %v710
    %v728 = vadd.f32 %v657, %v710
    %v729 = vadd.f32 %v658, %v710
    %v730 = vadd.f32 %v659, %v710
    %v731 = vadd.f32 %v660, %v710
    %v732 = vadd.f32 %v661, %v710
    %v733 = vadd.f32 %v662, %v710
    %v734 = vadd.f32 %v663, %v710
    %v735 = vadd.f32 %v664, %v710
    %v736 = vadd.f32 %v665, %v710
    %v737 = vadd.f32 %v666, %v710
    %v738 = vadd.f32 %v667, %v710
    %v739 = vadd.f32 %v668, %v710
    %v740 = vadd.f32 %v669, %v710
    %v741 = vadd.f32 %v670, %v710
    %v742 = vadd.f32 %v671, %v710
    %v743 = vadd.f32 %v672, %v710
    %v744 = vadd.f32 %v673, %v710
    %v745 = vadd.f32 %v674, %v710
    %v746 = vadd.f32 %v675, %v710
    %v747 = vadd.f32 %v676, %v710
    %v748 = vadd.f32 %v677, %v710
    %v749 = vadd.f32 %v678, %v710
    %v750 = vadd.f32 %v679, %v710
    %v751 = vadd.f32 %v680, %v710
    %v752 = vadd.f32 %v681, %v710
    %v753 = vadd.f32 %v682, %v710
    %v754 = vadd.f32 %v683, %v710
    %v755 = vadd.f32 %v684, %v710
    %v756 = vadd.f32 %v685, %v710
    %v757 = vadd.f32 %v686, %v710
    %v758 = vadd.f32 %v687, %v710
    %v759 = vadd.f32 %v688, %v710
    %v760 = vadd.f32 %v689, %v710
    %v761 = vadd.f32 %v690, %v710
    %v762 = vadd.f32 %v691, %v710
    %v763 = vadd.f32 %v692, %v710
    %v764 = vadd.f32 %v693, %v710
    %v765 = vadd.f32 %v694, %v710
    %v766 = vadd.f32 %v695, %v710
    %v767 = vadd.f32 %v696, %v710
    %v768 = vadd.f32 %v697, %v710
    %v769 = vadd.f32 %v698, %v710
    %v770 = vadd.f32 %v699, %v710
    %v771 = vadd.f32 %v700, %v710
    %v772 = vadd.f32 %v701, %v710
    %v773 = vadd.f32 %v702, %v710
    %v774 = vadd.f32 %v703, %v710
    %v775 = vadd.f32 %v704, %v710
    %v776 = vadd.f32 %v712, 3.0
    %v777 = vadd.f32 %v713, 3.0
    %v778 = vadd.f32 %v714, 3.0
    %v779 = vadd.f32 %v715, 3.0
    %v780 = vadd.f32 %v716, 3.0
    %v781 = vadd.f32 %v717, 3.0
    %v782 = vadd.f32 %v718, 3.0
    %v783 = vadd.f32 %v719, 3.0
    %v784 = vadd.f32 %v720, 3.0
    %v785 = vadd.f32 %v721, 3.0
    %v786 = vadd.f32 %v722, 3.0
    %v787 = vadd.f32 %v723, 3.0
    %v788 = vadd.f32 %v724, 3.0
    %v789 = vadd.f32 %v725, 3.0
    %v790 = vadd.f32 %v726, 3.0
    %v791 = vadd.f32 %v727, 3.0
    %v792 = vadd.f32 %v728, 3.0
    %v793 = vadd.f32 %v729, 3.0
    %v794 = vadd.f32 %v730, 3.0
    %v795 = vadd.f32 %v731, 3.0
    %v796 = vadd.f32 %v732, 3.0
    %v797 = vadd.f32 %v733, 3.0
    %v798 = vadd.f32 %v734, 3.0
    %v799 = vadd.f32 %v735, 3.0
    %v800 = vadd.f32 %v736, 3.0
    %v801 = vadd.f32 %v737, 3.0
    %v802 = vadd.f32 %v738, 3.0
    %v803 = vadd.f32 %v739, 3.0
    %v804 = vadd.f32 %v740, 3.0
    %v805 = vadd.f32 %v741, 3.0
    %v806 = vadd.f32 %v742, 3.0
    %v807 = vadd.f32 %v743, 3.0
    %v808 = vadd.f32 %v744, 3.0
    %v809 = vadd.f32 %v745, 3.0
    %v810 = vadd.f32 %v746, 3.0
    %v811 = vadd.f32 %v747, 3.0
    %v812 = vadd.f32 %v748, 3.0
    %v813 = vadd.f32 %v749, 3.0
    %v814 = vadd.f32 %v750, 3.0
    %v815 = vadd.f32 %v751, 3.0
    %v816 = vadd.f32 %v752, 3.0
    %v817 = vadd.f32 %v753, 3.0
    %v818 = vadd.f32 %v754, 3.0
    %v819 = vadd.f32 %v755, 3.0
    %v820 = vadd.f32 %v756, 3.0
    %v821 = vadd.f32 %v757, 3.0
    %v822 = vadd.f32 %v758, 3.0
    %v823 = vadd.f32 %v759, 3.0
    %v824 = vadd.f32 %v760, 3.0
    %v825 = vadd.f32 %v761, 3.0
    %v826 = vadd.f32 %v762, 3.0
    %v827 = vadd.f32 %v763, 3.0
    %v828 = vadd.f32 %v764, 3.0
    %v829 = vadd.f32 %v765, 3.0
    %v830 = vadd.f32 %v766, 3.0
    %v831 = vadd.f32 %v767, 3.0
    %v832 = vadd.f32 %v768, 3.0
    %v833 = vadd.f32 %v769, 3.0
    %v834 = vadd.f32 %v770, 3.0
    %v835 = vadd.f32 %v771, 3.0
    %v836 = vadd.f32 %v772, 3.0
    %v837 = vadd.f32 %v773, 3.0
    %v838 = vadd.f32 %v774, 3.0
    %v839 = vadd.f32 %v775, 3.0
    %v840 = vmax.f32 %v776, 0.0
    %v841 = vmax.f32 %v777, 0.0
    %v842 = vmax.f32 %v778, 0.0
    %v843 = vmax.f32 %v779, 0.0
    %v844 = vmax.f32 %v780, 0.0
    %v845 = vmax.f32 %v781, 0.0
    %v846 = vmax.f32 %v782, 0.0
    %v847 = vmax.f32 %v783, 0.0
    %v848 = vmax.f32 %v784, 0.0
    %v849 = vmax.f32 %v785, 0.0
    %v850 = vmax.f32 %v786, 0.0
    %v851 = vmax.f32 %v787, 0.0
    %v852 = vmax.f32 %v788, 0.0
    %v853 = vmax.f32 %v789, 0.0
    %v854 = vmax.f32 %v790, 0.0
    %v855 = vmax.f32 %v791, 0.0
    %v856 = vmax.f32 %v792, 0.0
    %v857 = vmax.f32 %v793, 0.0
    %v858 = vmax.f32 %v794, 0.0
    %v859 = vmax.f32 %v795, 0.0
    %v860 = vmax.f32 %v796, 0.0
    %v861 = vmax.f32 %v797, 0.0
    %v862 = vmax.f32 %v798, 0.0
    %v863 = vmax.f32 %v799, 0.0
    %v864 = vmax.f32 %v800, 0.0
    %v865 = vmax.f32 %v801, 0.0
    %v866 = vmax.f32 %v802, 0.0
    %v867 = vmax.f32 %v803, 0.0
    %v868 = vmax.f32 %v804, 0.0
    %v869 = vmax.f32 %v805, 0.0
    %v870 = vmax.f32 %v806, 0.0
    %v871 = vmax.f32 %v807, 0.0
    %v872 = vmax.f32 %v808, 0.0
    %v873 = vmax.f32 %v809, 0.0
    %v874 = vmax.f32 %v810, 0.0
    %v875 = vmax.f32 %v811, 0.0
    %v876 = vmax.f32 %v812, 0.0
    %v877 = vmax.f32 %v813, 0.0
    %v878 = vmax.f32 %v814, 0.0
    %v879 = vmax.f32 %v815, 0.0
    %v880 = vmax.f32 %v816, 0.0
    %v881 = vmax.f32 %v817, 0.0
    %v882 = vmax.f32 %v818, 0.0
    %v883 = vmax.f32 %v819, 0.0
    %v884 = vmax.f32 %v820, 0.0
    %v885 = vmax.f32 %v821, 0.0
    %v886 = vmax.f32 %v822, 0.0
    %v887 = vmax.f32 %v823, 0.0
    %v888 = vmax.f32 %v824, 0.0
    %v889 = vmax.f32 %v825, 0.0
    %v890 = vmax.f32 %v826, 0.0
    %v891 = vmax.f32 %v827, 0.0
    %v892 = vmax.f32 %v828, 0.0
    %v893 = vmax.f32 %v829, 0.0
    %v894 = vmax.f32 %v830, 0.0
    %v895 = vmax.f32 %v831, 0.0
    %v896 = vmax.f32 %v832, 0.0
    %v897 = vmax.f32 %v833, 0.0
    %v898 = vmax.f32 %v834, 0.0
    %v899 = vmax.f32 %v835, 0.0
    %v900 = vmax.f32 %v836, 0.0
    %v901 = vmax.f32 %v837, 0.0
    %v902 = vmax.f32 %v838, 0.0
    %v903 = vmax.f32 %v839, 0.0
    %v904 = vmin.f32 %v840, 6.0
    %v905 = vmin.f32 %v841, 6.0
    %v906 = vmin.f32 %v842, 6.0
    %v907 = vmin.f32 %v843, 6.0
    %v908 = vmin.f32 %v844, 6.0
    %v909 = vmin.f32 %v845, 6.0
    %v910 = vmin.f32 %v846, 6.0
    %v911 = vmin.f32 %v847, 6.0
    %v912 = vmin.f32 %v848, 6.0
    %v913 = vmin.f32 %v849, 6.0
    %v914 = vmin.f32 %v850, 6.0
    %v915 = vmin.f32 %v851, 6.0
    %v916 = vmin.f32 %v852, 6.0
    %v917 = vmin.f32 %v853, 6.0
    %v918 = vmin.f32 %v854, 6.0
    %v919 = vmin.f32 %v855, 6.0
    %v920 = vmin.f32 %v856, 6.0
    %v921 = vmin.f32 %v857, 6.0
    %v922 = vmin.f32 %v858, 6.0
    %v923 = vmin.f32 %v859, 6.0
    %v924 = vmin.f32 %v860, 6.0
    %v925 = vmin.f32 %v861, 6.0
    %v926 = vmin.f32 %v862, 6.0
    %v927 = vmin.f32 %v863, 6.0
    %v928 = vmin.f32 %v864, 6.0
    %v929 = vmin.f32 %v865, 6.0
    %v930 = vmin.f32 %v866, 6.0
    %v931 = vmin.f32 %v867, 6.0
    %v932 = vmin.f32 %v868, 6.0
    %v933 = vmin.f32 %v869, 6.0
    %v934 = vmin.f32 %v870, 6.0
    %v935 = vmin.f32 %v871, 6.0
    %v936 = vmin.f32 %v872, 6.0
    %v937 = vmin.f32 %v873, 6.0
    %v938 = vmin.f32 %v874, 6.0
    %v939 = vmin.f32 %v875, 6.0
    %v940 = vmin.f32 %v876, 6.0
    %v941 = vmin.f32 %v877, 6.0
    %v942 = vmin.f32 %v878, 6.0
    %v943 = vmin.f32 %v879, 6.0
    %v944 = vmin.f32 %v880, 6.0
    %v945 = vmin.f32 %v881, 6.0
    %v946 = vmin.f32 %v882, 6.0
    %v947 = vmin.f32 %v883, 6.0
    %v948 = vmin.f32 %v884, 6.0
    %v949 = vmin.f32 %v885, 6.0
    %v950 = vmin.f32 %v886, 6.0
    %v951 = vmin.f32 %v887, 6.0
    %v952 = vmin.f32 %v888, 6.0
    %v953 = vmin.f32 %v889, 6.0
    %v954 = vmin.f32 %v890, 6.0
    %v955 = vmin.f32 %v891, 6.0
    %v956 = vmin.f32 %v892, 6.0
    %v957 = vmin.f32 %v893, 6.0
    %v958 = vmin.f32 %v894, 6.0
    %v959 = vmin.f32 %v895, 6.0
    %v960 = vmin.f32 %v896, 6.0
    %v961 = vmin.f32 %v897, 6.0
    %v962 = vmin.f32 %v898, 6.0
    %v963 = vmin.f32 %v899, 6.0
    %v964 = vmin.f32 %v900, 6.0
    %v965 = vmin.f32 %v901, 6.0
    %v966 = vmin.f32 %v902, 6.0
    %v967 = vmin.f32 %v903, 6.0
    %v968 = vmul.f32 %v712, %v904
    %v969 = vmul.f32 %v713, %v905
    %v970 = vmul.f32 %v714, %v906
    %v971 = vmul.f32 %v715, %v907
    %v972 = vmul.f32 %v716, %v908
    %v973 = vmul.f32 %v717, %v909
    %v974 = vmul.f32 %v718, %v910
    %v975 = vmul.f32 %v719, %v911
    %v976 = vmul.f32 %v720, %v912
    %v977 = vmul.f32 %v721, %v913
    %v978 = vmul.f32 %v722, %v914
    %v979 = vmul.f32 %v723, %v915
    %v980 = vmul.f32 %v724, %v916
    %v981 = vmul.f32 %v725, %v917
    %v982 = vmul.f32 %v726, %v918
    %v983 = vmul.f32 %v727, %v919
    %v984 = vmul.f32 %v728, %v920
    %v985 = vmul.f32 %v729, %v921
    %v986 = vmul.f32 %v730, %v922
    %v987 = vmul.f32 %v731, %v923
    %v988 = vmul.f32 %v732, %v924
    %v989 = vmul.f32 %v733, %v925
    %v990 = vmul.f32 %v734, %v926
    %v991 = vmul.f32 %v735, %v927
    %v992 = vmul.f32 %v736, %v928
    %v993 = vmul.f32 %v737, %v929
    %v994 = vmul.f32 %v738, %v930
    %v995 = vmul.f32 %v739, %v931
    %v996 = vmul.f32 %v740, %v932
    %v997 = vmul.f32 %v741, %v933
    %v998 = vmul.f32 %v742, %v934
    %v999 = vmul.f32 %v743, %v935
    %v1000 = vmul.f32 %v744, %v936
    %v1001 = vmul.f32 %v745, %v937
    %v1002 = vmul.f32 %v746, %v938
    %v1003 = vmul.f32 %v747, %v939
    %v1004 = vmul.f32 %v748, %v940
    %v1005 = vmul.f32 %v749, %v941
    %v1006 = vmul.f32 %v750, %v942
    %v1007 = vmul.f32 %v751, %v943
    %v1008 = vmul.f32 %v752, %v944
    %v1009 = vmul.f32 %v753, %v945
    %v1010 = vmul.f32 %v754, %v946
    %v1011 = vmul.f32 %v755, %v947
    %v1012 = vmul.f32 %v756, %v948
    %v1013 = vmul.f32 %v757, %v949
    %v1014 = vmul.f32 %v758, %v950
    %v1015 = vmul.f32 %v759, %v951
    %v1016 = vmul.f32 %v760, %v952
    %v1017 = vmul.f32 %v761, %v953
    %v1018 = vmul.f32 %v762, %v954
    %v1019 = vmul.f32 %v763, %v955
    %v1020 = vmul.f32 %v764, %v956
    %v1021 = vmul.f32 %v765, %v957
    %v1022 = vmul.f32 %v766, %v958
    %v1023 = vmul.f32 %v767, %v959
    %v1024 = vmul.f32 %v768, %v960
    %v1025 = vmul.f32 %v769, %v961
    %v1026 = vmul.f32 %v770, %v962
    %v1027 = vmul.f32 %v771, %v963
    %v1028 = vmul.f32 %v772, %v964
    %v1029 = vmul.f32 %v773, %v965
    %v1030 = vmul.f32 %v774, %v966
    %v1031 = vmul.f32 %v775, %v967
    %v1032 = vmul.f32 %v968, 0.16666667
    %v1033 = vmul.f32 %v969, 0.16666667
    %v1034 = vmul.f32 %v970, 0.16666667
    %v1035 = vmul.f32 %v971, 0.16666667
    %v1036 = vmul.f32 %v972, 0.16666667
    %v1037 = vmul.f32 %v973, 0.16666667
    %v1038 = vmul.f32 %v974, 0.16666667
    %v1039 = vmul.f32 %v975, 0.16666667
    %v1040 = vmul.f32 %v976, 0.16666667
    %v1041 = vmul.f32 %v977, 0.16666667
    %v1042 = vmul.f32 %v978, 0.16666667
    %v1043 = vmul.f32 %v979, 0.16666667
    %v1044 = vmul.f32 %v980, 0.16666667
    %v1045 = vmul.f32 %v981, 0.16666667
    %v1046 = vmul.f32 %v982, 0.16666667
    %v1047 = vmul.f32 %v983, 0.16666667
    %v1048 = vmul.f32 %v984, 0.16666667
    %v1049 = vmul.f32 %v985, 0.16666667
    %v1050 = vmul.f32 %v986, 0.16666667
    %v1051 = vmul.f32 %v987, 0.16666667
    %v1052 = vmul.f32 %v988, 0.16666667
    %v1053 = vmul.f32 %v989, 0.16666667
    %v1054 = vmul.f32 %v990, 0.16666667
    %v1055 = vmul.f32 %v991, 0.16666667
    %v1056 = vmul.f32 %v992, 0.16666667
    %v1057 = vmul.f32 %v993, 0.16666667
    %v1058 = vmul.f32 %v994, 0.16666667
    %v1059 = vmul.f32 %v995, 0.16666667
    %v1060 = vmul.f32 %v996, 0.16666667
    %v1061 = vmul.f32 %v997, 0.16666667
    %v1062 = vmul.f32 %v998, 0.16666667
    %v1063 = vmul.f32 %v999, 0.16666667
    %v1064 = vmul.f32 %v1000, 0.16666667
    %v1065 = vmul.f32 %v1001, 0.16666667
    %v1066 = vmul.f32 %v1002, 0.16666667
    %v1067 = vmul.f32 %v1003, 0.16666667
    %v1068 = vmul.f32 %v1004, 0.16666667
    %v1069 = vmul.f32 %v1005, 0.16666667
    %v1070 = vmul.f32 %v1006, 0.16666667
    %v1071 = vmul.f32 %v1007, 0.16666667
    %v1072 = vmul.f32 %v1008, 0.16666667
    %v1073 = vmul.f32 %v1009, 0.16666667
    %v1074 = vmul.f32 %v1010, 0.16666667
    %v1075 = vmul.f32 %v1011, 0.16666667
    %v1076 = vmul.f32 %v1012, 0.16666667
    %v1077 = vmul.f32 %v1013, 0.16666667
    %v1078 = vmul.f32 %v1014, 0.16666667
    %v1079 = vmul.f32 %v1015, 0.16666667
    %v1080 = vmul.f32 %v1016, 0.16666667
    %v1081 = vmul.f32 %v1017, 0.16666667
    %v1082 = vmul.f32 %v1018, 0.16666667
    %v1083 = vmul.f32 %v1019, 0.16666667
    %v1084 = vmul.f32 %v1020, 0.16666667
    %v1085 = vmul.f32 %v1021, 0.16666667
    %v1086 = vmul.f32 %v1022, 0.16666667
    %v1087 = vmul.f32 %v1023, 0.16666667
    %v1088 = vmul.f32 %v1024, 0.16666667
    %v1089 = vmul.f32 %v1025, 0.16666667
    %v1090 = vmul.f32 %v1026, 0.16666667
    %v1091 = vmul.f32 %v1027, 0.16666667
    %v1092 = vmul.f32 %v1028, 0.16666667
    %v1093 = vmul.f32 %v1029, 0.16666667
    %v1094 = vmul.f32 %v1030, 0.16666667
    %v1095 = vmul.f32 %v1031, 0.16666667
    %v1096 = vpack.c.bf16 %v1033, %v1032
    %v1097 = vpack.c.bf16 %v1035, %v1034
    %v1098 = vpack.c.bf16 %v1037, %v1036
    %v1099 = vpack.c.bf16 %v1039, %v1038
    %v1100 = vpack.c.bf16 %v1041, %v1040
    %v1101 = vpack.c.bf16 %v1043, %v1042
    %v1102 = vpack.c.bf16 %v1045, %v1044
    %v1103 = vpack.c.bf16 %v1047, %v1046
    %v1104 = vpack.c.bf16 %v1049, %v1048
    %v1105 = vpack.c.bf16 %v1051, %v1050
    %v1106 = vpack.c.bf16 %v1053, %v1052
    %v1107 = vpack.c.bf16 %v1055, %v1054
    %v1108 = vpack.c.bf16 %v1057, %v1056
    %v1109 = vpack.c.bf16 %v1059, %v1058
    %v1110 = vpack.c.bf16 %v1061, %v1060
    %v1111 = vpack.c.bf16 %v1063, %v1062
    %v1112 = vpack.c.bf16 %v1065, %v1064
    %v1113 = vpack.c.bf16 %v1067, %v1066
    %v1114 = vpack.c.bf16 %v1069, %v1068
    %v1115 = vpack.c.bf16 %v1071, %v1070
    %v1116 = vpack.c.bf16 %v1073, %v1072
    %v1117 = vpack.c.bf16 %v1075, %v1074
    %v1118 = vpack.c.bf16 %v1077, %v1076
    %v1119 = vpack.c.bf16 %v1079, %v1078
    %v1120 = vpack.c.bf16 %v1081, %v1080
    %v1121 = vpack.c.bf16 %v1083, %v1082
    %v1122 = vpack.c.bf16 %v1085, %v1084
    %v1123 = vpack.c.bf16 %v1087, %v1086
    %v1124 = vpack.c.bf16 %v1089, %v1088
    %v1125 = vpack.c.bf16 %v1091, %v1090
    %v1126 = vpack.c.bf16 %v1093, %v1092
    %v1127 = vpack.c.bf16 %v1095, %v1094
    %v1160 = vunpack.c.l.b16 %v1096
    %v1161 = vunpack.c.h.b16 %v1096
    %v1162 = vunpack.c.l.b16 %v1097
    %v1163 = vunpack.c.h.b16 %v1097
    %v1164 = vunpack.c.l.b16 %v1098
    %v1165 = vunpack.c.h.b16 %v1098
    %v1166 = vunpack.c.l.b16 %v1099
    %v1167 = vunpack.c.h.b16 %v1099
    %v1168 = vunpack.c.l.b16 %v1100
    %v1169 = vunpack.c.h.b16 %v1100
    %v1170 = vunpack.c.l.b16 %v1101
    %v1171 = vunpack.c.h.b16 %v1101
    %v1172 = vunpack.c.l.b16 %v1102
    %v1173 = vunpack.c.h.b16 %v1102
    %v1174 = vunpack.c.l.b16 %v1103
    %v1175 = vunpack.c.h.b16 %v1103
    %v1176 = vunpack.c.l.b16 %v1104
    %v1177 = vunpack.c.h.b16 %v1104
    %v1178 = vunpack.c.l.b16 %v1105
    %v1179 = vunpack.c.h.b16 %v1105
    %v1180 = vunpack.c.l.b16 %v1106
    %v1181 = vunpack.c.h.b16 %v1106
    %v1182 = vunpack.c.l.b16 %v1107
    %v1183 = vunpack.c.h.b16 %v1107
    %v1184 = vunpack.c.l.b16 %v1108
    %v1185 = vunpack.c.h.b16 %v1108
    %v1186 = vunpack.c.l.b16 %v1109
    %v1187 = vunpack.c.h.b16 %v1109
    %v1188 = vunpack.c.l.b16 %v1110
    %v1189 = vunpack.c.h.b16 %v1110
    %v1190 = vunpack.c.l.b16 %v1111
    %v1191 = vunpack.c.h.b16 %v1111
    %v1192 = vunpack.c.l.b16 %v1112
    %v1193 = vunpack.c.h.b16 %v1112
    %v1194 = vunpack.c.l.b16 %v1113
    %v1195 = vunpack.c.h.b16 %v1113
    %v1196 = vunpack.c.l.b16 %v1114
    %v1197 = vunpack.c.h.b16 %v1114
    %v1198 = vunpack.c.l.b16 %v1115
    %v1199 = vunpack.c.h.b16 %v1115
    %v1200 = vunpack.c.l.b16 %v1116
    %v1201 = vunpack.c.h.b16 %v1116
    %v1202 = vunpack.c.l.b16 %v1117
    %v1203 = vunpack.c.h.b16 %v1117
    %v1204 = vunpack.c.l.b16 %v1118
    %v1205 = vunpack.c.h.b16 %v1118
    %v1206 = vunpack.c.l.b16 %v1119
    %v1207 = vunpack.c.h.b16 %v1119
    %v1208 = vunpack.c.l.b16 %v1120
    %v1209 = vunpack.c.h.b16 %v1120
    %v1210 = vunpack.c.l.b16 %v1121
    %v1211 = vunpack.c.h.b16 %v1121
    %v1212 = vunpack.c.l.b16 %v1122
    %v1213 = vunpack.c.h.b16 %v1122
    %v1214 = vunpack.c.l.b16 %v1123
    %v1215 = vunpack.c.h.b16 %v1123
    %v1216 = vunpack.c.l.b16 %v1124
    %v1217 = vunpack.c.h.b16 %v1124
    %v1218 = vunpack.c.l.b16 %v1125
    %v1219 = vunpack.c.h.b16 %v1125
    %v1220 = vunpack.c.l.b16 %v1126
    %v1221 = vunpack.c.h.b16 %v1126
    %v1222 = vunpack.c.l.b16 %v1127
    %v1223 = vunpack.c.h.b16 %v1127
    %v1224 = vpack.c.b16 %v1160, %v1160
    %v1225 = vpack.c.b16 %v1161, %v1161
    %v1226 = vpack.c.b16 %v1162, %v1162
    %v1227 = vpack.c.b16 %v1163, %v1163
    %v1228 = vpack.c.b16 %v1164, %v1164
    %v1229 = vpack.c.b16 %v1165, %v1165
    %v1230 = vpack.c.b16 %v1166, %v1166
    %v1231 = vpack.c.b16 %v1167, %v1167
    %v1232 = vpack.c.b16 %v1168, %v1168
    %v1233 = vpack.c.b16 %v1169, %v1169
    %v1234 = vpack.c.b16 %v1170, %v1170
    %v1235 = vpack.c.b16 %v1171, %v1171
    %v1236 = vpack.c.b16 %v1172, %v1172
    %v1237 = vpack.c.b16 %v1173, %v1173
    %v1238 = vpack.c.b16 %v1174, %v1174
    %v1239 = vpack.c.b16 %v1175, %v1175
    %v1240 = vpack.c.b16 %v1176, %v1176
    %v1241 = vpack.c.b16 %v1177, %v1177
    %v1242 = vpack.c.b16 %v1178, %v1178
    %v1243 = vpack.c.b16 %v1179, %v1179
    %v1244 = vpack.c.b16 %v1180, %v1180
    %v1245 = vpack.c.b16 %v1181, %v1181
    %v1246 = vpack.c.b16 %v1182, %v1182
    %v1247 = vpack.c.b16 %v1183, %v1183
    %v1248 = vpack.c.b16 %v1184, %v1184
    %v1249 = vpack.c.b16 %v1185, %v1185
    %v1250 = vpack.c.b16 %v1186, %v1186
    %v1251 = vpack.c.b16 %v1187, %v1187
    %v1252 = vpack.c.b16 %v1188, %v1188
    %v1253 = vpack.c.b16 %v1189, %v1189
    %v1254 = vpack.c.b16 %v1190, %v1190
    %v1255 = vpack.c.b16 %v1191, %v1191
    %v1256 = vpack.c.b16 %v1192, %v1192
    %v1257 = vpack.c.b16 %v1193, %v1193
    %v1258 = vpack.c.b16 %v1194, %v1194
    %v1259 = vpack.c.b16 %v1195, %v1195
    %v1260 = vpack.c.b16 %v1196, %v1196
    %v1261 = vpack.c.b16 %v1197, %v1197
    %v1262 = vpack.c.b16 %v1198, %v1198
    %v1263 = vpack.c.b16 %v1199, %v1199
    %v1264 = vpack.c.b16 %v1200, %v1200
    %v1265 = vpack.c.b16 %v1201, %v1201
    %v1266 = vpack.c.b16 %v1202, %v1202
    %v1267 = vpack.c.b16 %v1203, %v1203
    %v1268 = vpack.c.b16 %v1204, %v1204
    %v1269 = vpack.c.b16 %v1205, %v1205
    %v1270 = vpack.c.b16 %v1206, %v1206
    %v1271 = vpack.c.b16 %v1207, %v1207
    %v1272 = vpack.c.b16 %v1208, %v1208
    %v1273 = vpack.c.b16 %v1209, %v1209
    %v1274 = vpack.c.b16 %v1210, %v1210
    %v1275 = vpack.c.b16 %v1211, %v1211
    %v1276 = vpack.c.b16 %v1212, %v1212
    %v1277 = vpack.c.b16 %v1213, %v1213
    %v1278 = vpack.c.b16 %v1214, %v1214
    %v1279 = vpack.c.b16 %v1215, %v1215
    %v1280 = vpack.c.b16 %v1216, %v1216
    %v1281 = vpack.c.b16 %v1217, %v1217
    %v1282 = vpack.c.b16 %v1218, %v1218
    %v1283 = vpack.c.b16 %v1219, %v1219
    %v1284 = vpack.c.b16 %v1220, %v1220
    %v1285 = vpack.c.b16 %v1221, %v1221
    %v1286 = vpack.c.b16 %v1222, %v1222
    %v1287 = vpack.c.b16 %v1223, %v1223
    %1352 = vst [vmem:[#allocation2] sm:$0xf] %v1224
    %1353 = vst [vmem:[#allocation2 + $0x4] sm:$0xf] %v1225
    %1354 = vst [vmem:[#allocation2 + $0x8] sm:$0xf] %v1226
    %1355 = vst [vmem:[#allocation2 + $0xc] sm:$0xf] %v1227
    %1356 = vst [vmem:[#allocation2 + $0x10] sm:$0xf] %v1228
    %1357 = vst [vmem:[#allocation2 + $0x14] sm:$0xf] %v1229
    %1358 = vst [vmem:[#allocation2 + $0x18] sm:$0xf] %v1230
    %1359 = vst [vmem:[#allocation2 + $0x1c] sm:$0xf] %v1231
    %1360 = vst [vmem:[#allocation2 + $0x20] sm:$0xf] %v1232
    %1361 = vst [vmem:[#allocation2 + $0x24] sm:$0xf] %v1233
    %1362 = vst [vmem:[#allocation2 + $0x28] sm:$0xf] %v1234
    %1363 = vst [vmem:[#allocation2 + $0x2c] sm:$0xf] %v1235
    %1364 = vst [vmem:[#allocation2 + $0x30] sm:$0xf] %v1236
    %1365 = vst [vmem:[#allocation2 + $0x34] sm:$0xf] %v1237
    %1366 = vst [vmem:[#allocation2 + $0x38] sm:$0xf] %v1238
    %1367 = vst [vmem:[#allocation2 + $0x3c] sm:$0xf] %v1239
    %1368 = vst [vmem:[#allocation2 + $0x40] sm:$0xf] %v1240
    %1369 = vst [vmem:[#allocation2 + $0x44] sm:$0xf] %v1241
    %1370 = vst [vmem:[#allocation2 + $0x48] sm:$0xf] %v1242
    %1371 = vst [vmem:[#allocation2 + $0x4c] sm:$0xf] %v1243
    %1372 = vst [vmem:[#allocation2 + $0x50] sm:$0xf] %v1244
    %1373 = vst [vmem:[#allocation2 + $0x54] sm:$0xf] %v1245
    %1374 = vst [vmem:[#allocation2 + $0x58] sm:$0xf] %v1246
    %1375 = vst [vmem:[#allocation2 + $0x5c] sm:$0xf] %v1247
    %1376 = vst [vmem:[#allocation2 + $0x60] sm:$0xf] %v1248
    %1377 = vst [vmem:[#allocation2 + $0x64] sm:$0xf] %v1249
    %1378 = vst [vmem:[#allocation2 + $0x68] sm:$0xf] %v1250
    %1379 = vst [vmem:[#allocation2 + $0x6c] sm:$0xf] %v1251
    %1380 = vst [vmem:[#allocation2 + $0x70] sm:$0xf] %v1252
    %1381 = vst [vmem:[#allocation2 + $0x74] sm:$0xf] %v1253
    %1382 = vst [vmem:[#allocation2 + $0x78] sm:$0xf] %v1254
    %1383 = vst [vmem:[#allocation2 + $0x7c] sm:$0xf] %v1255
    %1384 = vst [vmem:[#allocation2 + $0x80] sm:$0xf] %v1256
    %1385 = vst [vmem:[#allocation2 + $0x84] sm:$0xf] %v1257
    %1386 = vst [vmem:[#allocation2 + $0x88] sm:$0xf] %v1258
    %1387 = vst [vmem:[#allocation2 + $0x8c] sm:$0xf] %v1259
    %1388 = vst [vmem:[#allocation2 + $0x90] sm:$0xf] %v1260
    %1389 = vst [vmem:[#allocation2 + $0x94] sm:$0xf] %v1261
    %1390 = vst [vmem:[#allocation2 + $0x98] sm:$0xf] %v1262
    %1391 = vst [vmem:[#allocation2 + $0x9c] sm:$0xf] %v1263
    %1392 = vst [vmem:[#allocation2 + $0xa0] sm:$0xf] %v1264
    %1393 = vst [vmem:[#allocation2 + $0xa4] sm:$0xf] %v1265
    %1394 = vst [vmem:[#allocation2 + $0xa8] sm:$0xf] %v1266
    %1395 = vst [vmem:[#allocation2 + $0xac] sm:$0xf] %v1267
    %1396 = vst [vmem:[#allocation2 + $0xb0] sm:$0xf] %v1268
    %1397 = vst [vmem:[#allocation2 + $0xb4] sm:$0xf] %v1269
    %1398 = vst [vmem:[#allocation2 + $0xb8] sm:$0xf] %v1270
    %1399 = vst [vmem:[#allocation2 + $0xbc] sm:$0xf] %v1271
    %1400 = vst [vmem:[#allocation2 + $0xc0] sm:$0xf] %v1272
    %1401 = vst [vmem:[#allocation2 + $0xc4] sm:$0xf] %v1273
    %1402 = vst [vmem:[#allocation2 + $0xc8] sm:$0xf] %v1274
    %1403 = vst [vmem:[#allocation2 + $0xcc] sm:$0xf] %v1275
    %1404 = vst [vmem:[#allocation2 + $0xd0] sm:$0xf] %v1276
    %1405 = vst [vmem:[#allocation2 + $0xd4] sm:$0xf] %v1277
    %1406 = vst [vmem:[#allocation2 + $0xd8] sm:$0xf] %v1278
    %1407 = vst [vmem:[#allocation2 + $0xdc] sm:$0xf] %v1279
    %1408 = vst [vmem:[#allocation2 + $0xe0] sm:$0xf] %v1280
    %1409 = vst [vmem:[#allocation2 + $0xe4] sm:$0xf] %v1281
    %1410 = vst [vmem:[#allocation2 + $0xe8] sm:$0xf] %v1282
    %1411 = vst [vmem:[#allocation2 + $0xec] sm:$0xf] %v1283
    %1412 = vst [vmem:[#allocation2 + $0xf0] sm:$0xf] %v1284
    %1413 = vst [vmem:[#allocation2 + $0xf4] sm:$0xf] %v1285
    %1414 = vst [vmem:[#allocation2 + $0xf8] sm:$0xf] %v1286
    %1415 = vst [vmem:[#allocation2 + $0xfc] sm:$0xf] %v1287
    // Predicated region
    $region18: #{tpu_custom_call.1} parent=1 // pred_check
      _
    $region19: #{tpu_custom_call.1} parent=1 // pred_check_branch
      %1417 = sbr.rel (0) target = $region21
    $region20: #{tpu_custom_call.1} parent=1 // pred_region
      %s1419 = ssub.s32 4096, 4096
      %1420 = vsyncadd [#allocation3], %s1419
      %s1421 = sshll.u32 [#allocation2], 4
      %s1422 = int_to_ptr.vmem [resolvable:$true] %s1421
      %1427 = dma.vmem_to_hbm [thread:$0]  %s1422, 4096, %s4, [#allocation3], 64, 64, 4
    $region21: #{tpu_custom_call.1} parent=1 // pred_fallthru
      _
    // Predicated region
    $region22: #{tpu_custom_call.1} parent=1 // pred_check
      _
    $region23: #{tpu_custom_call.1} parent=1 // pred_check_branch
      %1429 = sbr.rel (0) target = $region25
    $region24: #{tpu_custom_call.1} parent=1 // pred_region
      %1430 = dma.done [#allocation3], 4096
    $region25: #{tpu_custom_call.1} parent=1 // pred_fallthru
      _
    %1431 = vsyncpa [#allocation3], 1

</llo_original>
